<compile_context>
chip_gen: v5e
topology: v5e:2x2
jax: 0.10.0
libtpu: 0.0.40
codegen_flags: <defaults>
</compile_context>

<pallas_src>
import functools
import math

import jax
import jax.numpy as jnp
from jax import lax
from jax.experimental import pallas as pl
from jax.experimental.pallas import tpu as pltpu


NEG_SLOPE = 0.01      # F.leaky_relu default
MAX_TILE_T = 2048     # rows per time tile (obj tile @ bf16 = 1 MiB)
EEF_PAD = 8           # eef lane dim padded 3 -> 8 so eef_fc1 runs on the MXU


def _leaky_relu(x):
    # max(x, 0.01*x): 2 VPU ops instead of cmp+mul+select.
    return jnp.maximum(x, NEG_SLOPE * x)


def _round_up(x, m):
    return ((x + m - 1) // m) * m


def _reward_kernel(
    # tiled trajectory inputs: (1, tile_t, 8) / (1, tile_t, 256)
    eef_i_ref, obj_i_ref, eef_j_ref, obj_j_ref,
    # parameters (VMEM-resident; weights as (in, out), biases as (1, out), f32)
    w_obj1, b_obj1, w_obj2, b_obj2,
    w_eef1, b_eef1, w_eef2, b_eef2,
    w_fc1, b_fc1, w_fc2, b_fc2, w_fc3_row, b_fc3,
    # outputs: per-batch running sums, block shape (1, 1, 1)
    sum_i_ref, abs_i_ref, sum_j_ref, abs_j_ref,
    *, tile_t, t_total, padded_t, compute_dtype,
):
    t = pl.program_id(1)

    @pl.when(t == 0)
    def _init():
        sum_i_ref[...] = jnp.zeros_like(sum_i_ref)
        abs_i_ref[...] = jnp.zeros_like(abs_i_ref)
        sum_j_ref[...] = jnp.zeros_like(sum_j_ref)
        abs_j_ref[...] = jnp.zeros_like(abs_j_ref)

    def mm(x, w_ref):
        # bf16 (or f32) operands, f32 accumulation on the MXU.
        return jnp.dot(x, w_ref[...], preferred_element_type=jnp.float32)

    def cum_tile(eef_ref, obj_ref):
        eef = eef_ref[0]                      # (tile_t, 8)
        obj = obj_ref[0]                      # (tile_t, 256)

        # --- object branch (MXU) ------------------------------------------
        o = _leaky_relu(mm(obj, w_obj1) + b_obj1[...])
        o = _leaky_relu(mm(o.astype(compute_dtype), w_obj2) + b_obj2[...])

        # --- eef branch: zero-padded K=8 matmul on the MXU ------------------
        e = _leaky_relu(mm(eef, w_eef1) + b_eef1[...])
        e = _leaky_relu(mm(e.astype(compute_dtype), w_eef2) + b_eef2[...])

        # --- fc1 as a single K=256 matmul -----------------------------------
        # e and o are both exactly 128 lanes, so this concat is vreg-aligned
        # (no relayout); one pass fills the 256-deep v6e/v7x MXU.
        # (dropout1/2/3 are identity in eval mode.)
        x = jnp.concatenate(
            [e.astype(compute_dtype), o.astype(compute_dtype)], axis=-1)
        x = _leaky_relu(mm(x, w_fc1) + b_fc1[...])
        x = _leaky_relu(mm(x.astype(compute_dtype), w_fc2) + b_fc2[...])

        # --- fc3 (64 -> 1): VPU multiply + lane reduce (no width-1 MXU pass)
        r = jnp.sum(x * w_fc3_row[...], axis=-1, keepdims=True) + b_fc3[...]

        if padded_t != t_total:
            # Tail tile runs past T: the OOB rows of the input block are
            # unspecified, so mask with a select (NOT a multiply).
            rows = t * tile_t + lax.broadcasted_iota(jnp.int32, (tile_t, 1), 0)
            r = jnp.where(rows < t_total, r, 0.0)
        return r

    r_i = cum_tile(eef_i_ref, obj_i_ref)
    r_j = cum_tile(eef_j_ref, obj_j_ref)

    # Accumulate the time reduction across the last ("arbitrary") grid axis.
    sum_i_ref[0] = sum_i_ref[0] + jnp.sum(r_i, axis=0, keepdims=True)
    abs_i_ref[0] = abs_i_ref[0] + jnp.sum(jnp.abs(r_i), axis=0, keepdims=True)
    sum_j_ref[0] = sum_j_ref[0] + jnp.sum(r_j, axis=0, keepdims=True)
    abs_j_ref[0] = abs_j_ref[0] + jnp.sum(jnp.abs(r_j), axis=0, keepdims=True)


def init_params(key):
    """nn.Linear-style init (uniform +/- 1/sqrt(fan_in)).
    Weights stored transposed as (in, out); biases as (1, out).
    NOTE: when importing real PyTorch weights (stored (out, in)), transpose."""
    dims = {
        "obj_fc1": (256, 128),
        "obj_fc2": (128, 128),
        "eef_fc1": (3, 128),
        "eef_fc2": (128, 128),
        "fc1": (256, 128),     # rows 0..127 = eef part, 128..255 = obj part
        "fc2": (128, 64),
        "fc3": (64, 1),
    }
    params = {}
    for name, (fan_in, fan_out) in dims.items():
        key, kw, kb = jax.random.split(key, 3)
        bound = 1.0 / math.sqrt(float(fan_in))
        params[name + "_w"] = jax.random.uniform(
            kw, (fan_in, fan_out), jnp.float32, -bound, bound)
        params[name + "_b"] = jax.random.uniform(
            kb, (1, fan_out), jnp.float32, -bound, bound)
    return params


@functools.partial(jax.jit, static_argnames=("use_bf16",))
def reward_net_forward(params, ee_traj_i, obj_emb_i, ee_traj_j, obj_emb_j,
                       use_bf16=True):
    B, T, eef_dim = ee_traj_i.shape
    _, _, obj_dim = obj_emb_i.shape
    cdt = jnp.bfloat16 if use_bf16 else jnp.float32

    # eef: cast + zero-pad lanes 3 -> 8 (tiny stream; fused by XLA). obj: cast.
    def prep_eef(x):
        return jnp.pad(x.astype(cdt), ((0, 0), (0, 0), (0, EEF_PAD - eef_dim)))

    eef_i = prep_eef(ee_traj_i)
    eef_j = prep_eef(ee_traj_j)
    obj_i = obj_emb_i.astype(cdt)
    obj_j = obj_emb_j.astype(cdt)

    # Time tiling: minimal tail waste, sublane dim a multiple of 8.
    n_tt = pl.cdiv(T, MAX_TILE_T)
    tile_t = _round_up(pl.cdiv(T, n_tt), 8)
    n_tt = pl.cdiv(T, tile_t)
    padded_t = n_tt * tile_t

    def w(name):
        return params[name + "_w"].astype(cdt)

    def b(name):
        return params[name + "_b"]            # biases stay f32

    w_eef1 = jnp.pad(params["eef_fc1_w"],
                     ((0, EEF_PAD - eef_dim), (0, 0))).astype(cdt)

    param_args = [
        w("obj_fc1"), b("obj_fc1"),
        w("obj_fc2"), b("obj_fc2"),
        w_eef1, b("eef_fc1"),
        w("eef_fc2"), b("eef_fc2"),
        w("fc1"), b("fc1"),
        w("fc2"), b("fc2"),
        params["fc3_w"].T,                    # (1, 64) f32 for the VPU path
        params["fc3_b"].reshape(1, 1),        # (1, 1)
    ]

    traj_specs = [
        pl.BlockSpec((1, tile_t, EEF_PAD), lambda bb, tt: (bb, tt, 0)),
        pl.BlockSpec((1, tile_t, obj_dim), lambda bb, tt: (bb, tt, 0)),
        pl.BlockSpec((1, tile_t, EEF_PAD), lambda bb, tt: (bb, tt, 0)),
        pl.BlockSpec((1, tile_t, obj_dim), lambda bb, tt: (bb, tt, 0)),
    ]
    # Constant block index -> weights stay resident in VMEM, no re-DMA.
    # TODO(synk): pipeline_mode=pl.Buffered(1) here would single-buffer the
    #             (tiny) weight blocks and free a little extra VMEM headroom.
    param_specs = [pl.BlockSpec(p.shape, lambda bb, tt: (0, 0))
                   for p in param_args]
    out_spec = pl.BlockSpec((1, 1, 1), lambda bb, tt: (bb, 0, 0))
    out_shape = tuple(jax.ShapeDtypeStruct((B, 1, 1), jnp.float32)
                      for _ in range(4))

    rows = 2 * B * T
    layer_macs = (obj_dim * 128 + 128 * 128 + EEF_PAD * 128 + 128 * 128
                  + 256 * 128 + 128 * 64 + 64)
    flops = 2 * rows * layer_macs
    itemsize = 2 if use_bf16 else 4
    param_bytes = sum(math.prod(p.shape) * p.dtype.itemsize for p in param_args)
    bytes_accessed = (rows * (obj_dim + EEF_PAD) * itemsize
                      + param_bytes + 4 * B * 4)

    kernel = functools.partial(
        _reward_kernel, tile_t=tile_t, t_total=T, padded_t=padded_t,
        compute_dtype=cdt)

    sums_i, abss_i, sums_j, abss_j = pl.pallas_call(
        kernel,
        out_shape=out_shape,
        grid=(B, n_tt),
        in_specs=traj_specs + param_specs,
        out_specs=(out_spec, out_spec, out_spec, out_spec),
        compiler_params=pltpu.CompilerParams(
            dimension_semantics=("parallel", "arbitrary"),
            vmem_limit_bytes=32 * 1024 * 1024,
        ),
        cost_estimate=pl.CostEstimate(
            flops=int(flops), transcendentals=0,
            bytes_accessed=int(bytes_accessed)),
    )(eef_i, obj_i, eef_j, obj_j, *param_args)

    logits = jnp.concatenate([sums_i[:, 0, :], sums_j[:, 0, :]], axis=1)  # (B,2)
    abs_sum = abss_i[:, 0, :] + abss_j[:, 0, :]                            # (B,1)
    return logits, abs_sum


def reward_net_reference(params, ee_traj_i, obj_emb_i, ee_traj_j, obj_emb_j):
    """Pure-JAX f32 reference (mirrors the PyTorch module in eval mode)."""
    def lin(x, name):
        return x @ params[name + "_w"] + params[name + "_b"]

    def cum_return(eef_traj, obj_emb):
        obj = _leaky_relu(lin(obj_emb, "obj_fc1"))
        obj = _leaky_relu(lin(obj, "obj_fc2"))
        eef = _leaky_relu(lin(eef_traj, "eef_fc1"))
        eef = _leaky_relu(lin(eef, "eef_fc2"))
        x = jnp.concatenate([eef, obj], axis=-1)
        x = _leaky_relu(lin(x, "fc1"))
        x = _leaky_relu(lin(x, "fc2"))
        r = lin(x, "fc3")                      # (B, T, 1)
        return jnp.sum(r, axis=1), jnp.sum(jnp.abs(r), axis=1)

    cum_i, abs_i = cum_return(ee_traj_i, obj_emb_i)
    cum_j, abs_j = cum_return(ee_traj_j, obj_emb_j)
    return jnp.concatenate([cum_i, cum_j], axis=1), abs_i + abs_j


def _check_bf16(logits, abs_sum, ref_logits, ref_abs, rel=0.07):
    """bf16-path sanity check: errors bounded by rel * (max |reward| mass)."""
    scale = float(jnp.max(ref_abs)) + 1.0
    assert float(jnp.max(jnp.abs(logits - ref_logits))) <= rel * scale
    assert float(jnp.max(jnp.abs(abs_sum - ref_abs))) <= rel * scale


if __name__ == "__main__":
    key = jax.random.PRNGKey(0)
    k_params, k1, k2, k3, k4 = jax.random.split(key, 5)
    params = init_params(k_params)

    # --- small config (single time tile, T divisible by 8) -------------------
    B, T = 2, 8
    ee_traj_i = jax.random.normal(k1, (B, T, 3), jnp.float32)
    obj_emb_i = jax.random.normal(k2, (B, T, 256), jnp.float32)
    ee_traj_j = jax.random.normal(k3, (B, T, 3), jnp.float32)
    obj_emb_j = jax.random.normal(k4, (B, T, 256), jnp.float32)

    ref_logits, ref_abs = reward_net_reference(
        params, ee_traj_i, obj_emb_i, ee_traj_j, obj_emb_j)

    # f32 path: exact parity with the module.
    logits, abs_sum = reward_net_forward(
        params, ee_traj_i, obj_emb_i, ee_traj_j, obj_emb_j, use_bf16=False)
    jax.block_until_ready((logits, abs_sum))
    assert logits.shape == (B, 2) and abs_sum.shape == (B, 1)
    assert jnp.allclose(logits, ref_logits, atol=1e-3, rtol=1e-3)
    assert jnp.allclose(abs_sum, ref_abs, atol=1e-3, rtol=1e-3)

    # bf16 MXU path: relaxed tolerance.
    logits_bf, abs_bf = reward_net_forward(
        params, ee_traj_i, obj_emb_i, ee_traj_j, obj_emb_j, use_bf16=True)
    jax.block_until_ready((logits_bf, abs_bf))
    _check_bf16(logits_bf, abs_bf, ref_logits, ref_abs)

    # --- long trajectory: multi-tile time reduction + masked tail tile -------
    B2, T2 = 2, 3000
    k5, k6, k7, k8 = jax.random.split(jax.random.PRNGKey(1), 4)
    ee2_i = jax.random.normal(k5, (B2, T2, 3), jnp.float32)
    ob2_i = jax.random.normal(k6, (B2, T2, 256), jnp.float32)
    ee2_j = jax.random.normal(k7, (B2, T2, 3), jnp.float32)
    ob2_j = jax.random.normal(k8, (B2, T2, 256), jnp.float32)

    ref_logits2, ref_abs2 = reward_net_reference(params, ee2_i, ob2_i, ee2_j, ob2_j)

    logits2, abs2 = reward_net_forward(
        params, ee2_i, ob2_i, ee2_j, ob2_j, use_bf16=False)
    jax.block_until_ready((logits2, abs2))
    assert jnp.allclose(logits2, ref_logits2, atol=5e-2, rtol=1e-3)
    assert jnp.allclose(abs2, ref_abs2, atol=5e-2, rtol=1e-3)

    logits2_bf, abs2_bf = reward_net_forward(
        params, ee2_i, ob2_i, ee2_j, ob2_j, use_bf16=True)
    jax.block_until_ready((logits2_bf, abs2_bf))
    _check_bf16(logits2_bf, abs2_bf, ref_logits2, ref_abs2)

    print("KERNEL_OK")
</pallas_src>

<mosaic_0001>
module attributes {stable_mosaic.version = 11 : i64} {
  func.func @_reward_kernel(%arg0: i32, %arg1: i32, %arg2: memref<1x8x8xf32, #tpu.memory_space<vmem>>, %arg3: memref<1x8x256xf32, #tpu.memory_space<vmem>>, %arg4: memref<1x8x8xf32, #tpu.memory_space<vmem>>, %arg5: memref<1x8x256xf32, #tpu.memory_space<vmem>>, %arg6: memref<256x128xf32, #tpu.memory_space<vmem>>, %arg7: memref<1x128xf32, #tpu.memory_space<vmem>>, %arg8: memref<128x128xf32, #tpu.memory_space<vmem>>, %arg9: memref<1x128xf32, #tpu.memory_space<vmem>>, %arg10: memref<8x128xf32, #tpu.memory_space<vmem>>, %arg11: memref<1x128xf32, #tpu.memory_space<vmem>>, %arg12: memref<128x128xf32, #tpu.memory_space<vmem>>, %arg13: memref<1x128xf32, #tpu.memory_space<vmem>>, %arg14: memref<256x128xf32, #tpu.memory_space<vmem>>, %arg15: memref<1x128xf32, #tpu.memory_space<vmem>>, %arg16: memref<128x64xf32, #tpu.memory_space<vmem>>, %arg17: memref<1x64xf32, #tpu.memory_space<vmem>>, %arg18: memref<1x64xf32, #tpu.memory_space<vmem>>, %arg19: memref<1x1xf32, #tpu.memory_space<vmem>>, %arg20: memref<1x1x1xf32, #tpu.memory_space<vmem>>, %arg21: memref<1x1x1xf32, #tpu.memory_space<vmem>>, %arg22: memref<1x1x1xf32, #tpu.memory_space<vmem>>, %arg23: memref<1x1x1xf32, #tpu.memory_space<vmem>>) attributes {dimension_semantics = [#tpu.dimension_semantics<parallel>, #tpu.dimension_semantics<arbitrary>], iteration_bounds = array<i64: 2, 1>, scalar_prefetch = 0 : i64, scratch_operands = 0 : i64, tpu.core_type = #tpu.core_type<tc>, window_params = [{transform_indices = @transform_0, window_bounds = array<i64: 1, 8, 8>}, {transform_indices = @transform_1, window_bounds = array<i64: 1, 8, 256>}, {transform_indices = @transform_2, window_bounds = array<i64: 1, 8, 8>}, {transform_indices = @transform_3, window_bounds = array<i64: 1, 8, 256>}, {pipeline_mode = #tpu.pipeline_mode<synchronous>, transform_indices = @transform_4, window_bounds = array<i64: 256, 128>}, {pipeline_mode = #tpu.pipeline_mode<synchronous>, transform_indices = @transform_5, window_bounds = array<i64: 1, 128>}, {pipeline_mode = #tpu.pipeline_mode<synchronous>, transform_indices = @transform_6, window_bounds = array<i64: 128, 128>}, {pipeline_mode = #tpu.pipeline_mode<synchronous>, transform_indices = @transform_7, window_bounds = array<i64: 1, 128>}, {pipeline_mode = #tpu.pipeline_mode<synchronous>, transform_indices = @transform_8, window_bounds = array<i64: 8, 128>}, {pipeline_mode = #tpu.pipeline_mode<synchronous>, transform_indices = @transform_9, window_bounds = array<i64: 1, 128>}, {pipeline_mode = #tpu.pipeline_mode<synchronous>, transform_indices = @transform_10, window_bounds = array<i64: 128, 128>}, {pipeline_mode = #tpu.pipeline_mode<synchronous>, transform_indices = @transform_11, window_bounds = array<i64: 1, 128>}, {pipeline_mode = #tpu.pipeline_mode<synchronous>, transform_indices = @transform_12, window_bounds = array<i64: 256, 128>}, {pipeline_mode = #tpu.pipeline_mode<synchronous>, transform_indices = @transform_13, window_bounds = array<i64: 1, 128>}, {pipeline_mode = #tpu.pipeline_mode<synchronous>, transform_indices = @transform_14, window_bounds = array<i64: 128, 64>}, {pipeline_mode = #tpu.pipeline_mode<synchronous>, transform_indices = @transform_15, window_bounds = array<i64: 1, 64>}, {pipeline_mode = #tpu.pipeline_mode<synchronous>, transform_indices = @transform_16, window_bounds = array<i64: 1, 64>}, {pipeline_mode = #tpu.pipeline_mode<synchronous>, transform_indices = @transform_17, window_bounds = array<i64: 1, 1>}, {transform_indices = @transform_18, window_bounds = array<i64: 1, 1, 1>}, {transform_indices = @transform_19, window_bounds = array<i64: 1, 1, 1>}, {transform_indices = @transform_20, window_bounds = array<i64: 1, 1, 1>}, {transform_indices = @transform_21, window_bounds = array<i64: 1, 1, 1>}]} {
    %c0_i32 = arith.constant 0 : i32
    %0 = arith.cmpi eq, %arg1, %c0_i32 : i32
    %1 = arith.extui %0 : i1 to i32
    %c0_i32_0 = arith.constant 0 : i32
    %2 = arith.cmpi ne, %1, %c0_i32_0 : i32
    scf.if %2 {
      %cst_121 = arith.constant 0.000000e+00 : f32
      %159 = vector.broadcast %cst_121 : f32 to vector<1x1x1xf32>
      %c0_122 = arith.constant 0 : index
      %c0_123 = arith.constant 0 : index
      %c0_124 = arith.constant 0 : index
      %160 = vector.load %arg20[%c0_122, %c0_123, %c0_124] : memref<1x1x1xf32, #tpu.memory_space<vmem>>, vector<1x1x1xf32>
      tpu.vector_store %arg20[%c0_122, %c0_123, %c0_124], %159 {strides = array<i32>} : memref<1x1x1xf32, #tpu.memory_space<vmem>>, vector<1x1x1xf32>,
      %cst_125 = arith.constant 0.000000e+00 : f32
      %161 = vector.broadcast %cst_125 : f32 to vector<1x1x1xf32>
      %c0_126 = arith.constant 0 : index
      %c0_127 = arith.constant 0 : index
      %c0_128 = arith.constant 0 : index
      %162 = vector.load %arg21[%c0_126, %c0_127, %c0_128] : memref<1x1x1xf32, #tpu.memory_space<vmem>>, vector<1x1x1xf32>
      tpu.vector_store %arg21[%c0_126, %c0_127, %c0_128], %161 {strides = array<i32>} : memref<1x1x1xf32, #tpu.memory_space<vmem>>, vector<1x1x1xf32>,
      %cst_129 = arith.constant 0.000000e+00 : f32
      %163 = vector.broadcast %cst_129 : f32 to vector<1x1x1xf32>
      %c0_130 = arith.constant 0 : index
      %c0_131 = arith.constant 0 : index
      %c0_132 = arith.constant 0 : index
      %164 = vector.load %arg22[%c0_130, %c0_131, %c0_132] : memref<1x1x1xf32, #tpu.memory_space<vmem>>, vector<1x1x1xf32>
      tpu.vector_store %arg22[%c0_130, %c0_131, %c0_132], %163 {strides = array<i32>} : memref<1x1x1xf32, #tpu.memory_space<vmem>>, vector<1x1x1xf32>,
      %cst_133 = arith.constant 0.000000e+00 : f32
      %165 = vector.broadcast %cst_133 : f32 to vector<1x1x1xf32>
      %c0_134 = arith.constant 0 : index
      %c0_135 = arith.constant 0 : index
      %c0_136 = arith.constant 0 : index
      %166 = vector.load %arg23[%c0_134, %c0_135, %c0_136] : memref<1x1x1xf32, #tpu.memory_space<vmem>>, vector<1x1x1xf32>
      tpu.vector_store %arg23[%c0_134, %c0_135, %c0_136], %165 {strides = array<i32>} : memref<1x1x1xf32, #tpu.memory_space<vmem>>, vector<1x1x1xf32>,
    } else {
    }
    %c0 = arith.constant 0 : index
    %c0_1 = arith.constant 0 : index
    %c0_2 = arith.constant 0 : index
    %3 = vector.load %arg2[%c0, %c0_1, %c0_2] : memref<1x8x8xf32, #tpu.memory_space<vmem>>, vector<1x8x8xf32>
    %4 = vector.shape_cast %3 : vector<1x8x8xf32> to vector<8x8xf32>
    %c0_3 = arith.constant 0 : index
    %c0_4 = arith.constant 0 : index
    %c0_5 = arith.constant 0 : index
    %5 = vector.load %arg3[%c0_3, %c0_4, %c0_5] : memref<1x8x256xf32, #tpu.memory_space<vmem>>, vector<1x8x256xf32>
    %6 = vector.shape_cast %5 : vector<1x8x256xf32> to vector<8x256xf32>
    %c0_6 = arith.constant 0 : index
    %c0_7 = arith.constant 0 : index
    %7 = vector.load %arg6[%c0_6, %c0_7] : memref<256x128xf32, #tpu.memory_space<vmem>>, vector<256x128xf32>
    %cst = arith.constant dense<0.000000e+00> : vector<8x128xf32>
    %8 = tpu.matmul %6, %7, %cst {dimension_numbers = #tpu.dot_dimension_numbers<[1], [0], [0], [1], [0, 0, 1, 1], [], []>} : vector<8x256xf32>, vector<256x128xf32>, vector<8x128xf32> -> vector<8x128xf32>
    %c0_8 = arith.constant 0 : index
    %c0_9 = arith.constant 0 : index
    %9 = vector.load %arg7[%c0_8, %c0_9] : memref<1x128xf32, #tpu.memory_space<vmem>>, vector<1x128xf32>
    %10 = vector.broadcast %9 : vector<1x128xf32> to vector<8x128xf32>
    %11 = arith.addf %8, %10 : vector<8x128xf32>
    %cst_10 = arith.constant 0.00999999977 : f32
    %12 = vector.broadcast %cst_10 : f32 to vector<8x128xf32>
    %13 = arith.mulf %12, %11 : vector<8x128xf32>
    %14 = arith.maximumf %11, %13 : vector<8x128xf32>
    %c0_11 = arith.constant 0 : index
    %c0_12 = arith.constant 0 : index
    %15 = vector.load %arg8[%c0_11, %c0_12] : memref<128x128xf32, #tpu.memory_space<vmem>>, vector<128x128xf32>
    %cst_13 = arith.constant dense<0.000000e+00> : vector<8x128xf32>
    %16 = tpu.matmul %14, %15, %cst_13 {dimension_numbers = #tpu.dot_dimension_numbers<[1], [0], [0], [1], [0, 0, 1, 1], [], []>} : vector<8x128xf32>, vector<128x128xf32>, vector<8x128xf32> -> vector<8x128xf32>
    %c0_14 = arith.constant 0 : index
    %c0_15 = arith.constant 0 : index
    %17 = vector.load %arg9[%c0_14, %c0_15] : memref<1x128xf32, #tpu.memory_space<vmem>>, vector<1x128xf32>
    %18 = vector.broadcast %17 : vector<1x128xf32> to vector<8x128xf32>
    %19 = arith.addf %16, %18 : vector<8x128xf32>
    %cst_16 = arith.constant 0.00999999977 : f32
    %20 = vector.broadcast %cst_16 : f32 to vector<8x128xf32>
    %21 = arith.mulf %20, %19 : vector<8x128xf32>
    %22 = arith.maximumf %19, %21 : vector<8x128xf32>
    %c0_17 = arith.constant 0 : index
    %c0_18 = arith.constant 0 : index
    %23 = vector.load %arg10[%c0_17, %c0_18] : memref<8x128xf32, #tpu.memory_space<vmem>>, vector<8x128xf32>
    %cst_19 = arith.constant dense<0.000000e+00> : vector<8x128xf32>
    %24 = tpu.matmul %4, %23, %cst_19 {dimension_numbers = #tpu.dot_dimension_numbers<[1], [0], [0], [1], [0, 0, 1, 1], [], []>} : vector<8x8xf32>, vector<8x128xf32>, vector<8x128xf32> -> vector<8x128xf32>
    %c0_20 = arith.constant 0 : index
    %c0_21 = arith.constant 0 : index
    %25 = vector.load %arg11[%c0_20, %c0_21] : memref<1x128xf32, #tpu.memory_space<vmem>>, vector<1x128xf32>
    %26 = vector.broadcast %25 : vector<1x128xf32> to vector<8x128xf32>
    %27 = arith.addf %24, %26 : vector<8x128xf32>
    %cst_22 = arith.constant 0.00999999977 : f32
    %28 = vector.broadcast %cst_22 : f32 to vector<8x128xf32>
    %29 = arith.mulf %28, %27 : vector<8x128xf32>
    %30 = arith.maximumf %27, %29 : vector<8x128xf32>
    %c0_23 = arith.constant 0 : index
    %c0_24 = arith.constant 0 : index
    %31 = vector.load %arg12[%c0_23, %c0_24] : memref<128x128xf32, #tpu.memory_space<vmem>>, vector<128x128xf32>
    %cst_25 = arith.constant dense<0.000000e+00> : vector<8x128xf32>
    %32 = tpu.matmul %30, %31, %cst_25 {dimension_numbers = #tpu.dot_dimension_numbers<[1], [0], [0], [1], [0, 0, 1, 1], [], []>} : vector<8x128xf32>, vector<128x128xf32>, vector<8x128xf32> -> vector<8x128xf32>
    %c0_26 = arith.constant 0 : index
    %c0_27 = arith.constant 0 : index
    %33 = vector.load %arg13[%c0_26, %c0_27] : memref<1x128xf32, #tpu.memory_space<vmem>>, vector<1x128xf32>
    %34 = vector.broadcast %33 : vector<1x128xf32> to vector<8x128xf32>
    %35 = arith.addf %32, %34 : vector<8x128xf32>
    %cst_28 = arith.constant 0.00999999977 : f32
    %36 = vector.broadcast %cst_28 : f32 to vector<8x128xf32>
    %37 = arith.mulf %36, %35 : vector<8x128xf32>
    %38 = arith.maximumf %35, %37 : vector<8x128xf32>
    %39 = tpu.concatenate %38, %22 in 1 : vector<8x128xf32>, vector<8x128xf32> -> vector<8x256xf32>
    %c0_29 = arith.constant 0 : index
    %c0_30 = arith.constant 0 : index
    %40 = vector.load %arg14[%c0_29, %c0_30] : memref<256x128xf32, #tpu.memory_space<vmem>>, vector<256x128xf32>
    %cst_31 = arith.constant dense<0.000000e+00> : vector<8x128xf32>
    %41 = tpu.matmul %39, %40, %cst_31 {dimension_numbers = #tpu.dot_dimension_numbers<[1], [0], [0], [1], [0, 0, 1, 1], [], []>} : vector<8x256xf32>, vector<256x128xf32>, vector<8x128xf32> -> vector<8x128xf32>
    %c0_32 = arith.constant 0 : index
    %c0_33 = arith.constant 0 : index
    %42 = vector.load %arg15[%c0_32, %c0_33] : memref<1x128xf32, #tpu.memory_space<vmem>>, vector<1x128xf32>
    %43 = vector.broadcast %42 : vector<1x128xf32> to vector<8x128xf32>
    %44 = arith.addf %41, %43 : vector<8x128xf32>
    %cst_34 = arith.constant 0.00999999977 : f32
    %45 = vector.broadcast %cst_34 : f32 to vector<8x128xf32>
    %46 = arith.mulf %45, %44 : vector<8x128xf32>
    %47 = arith.maximumf %44, %46 : vector<8x128xf32>
    %c0_35 = arith.constant 0 : index
    %c0_36 = arith.constant 0 : index
    %48 = vector.load %arg16[%c0_35, %c0_36] : memref<128x64xf32, #tpu.memory_space<vmem>>, vector<128x64xf32>
    %cst_37 = arith.constant dense<0.000000e+00> : vector<8x64xf32>
    %49 = tpu.matmul %47, %48, %cst_37 {dimension_numbers = #tpu.dot_dimension_numbers<[1], [0], [0], [1], [0, 0, 1, 1], [], []>} : vector<8x128xf32>, vector<128x64xf32>, vector<8x64xf32> -> vector<8x64xf32>
    %c0_38 = arith.constant 0 : index
    %c0_39 = arith.constant 0 : index
    %50 = vector.load %arg17[%c0_38, %c0_39] : memref<1x64xf32, #tpu.memory_space<vmem>>, vector<1x64xf32>
    %51 = vector.broadcast %50 : vector<1x64xf32> to vector<8x64xf32>
    %52 = arith.addf %49, %51 : vector<8x64xf32>
    %cst_40 = arith.constant 0.00999999977 : f32
    %53 = vector.broadcast %cst_40 : f32 to vector<8x64xf32>
    %54 = arith.mulf %53, %52 : vector<8x64xf32>
    %55 = arith.maximumf %52, %54 : vector<8x64xf32>
    %c0_41 = arith.constant 0 : index
    %c0_42 = arith.constant 0 : index
    %56 = vector.load %arg18[%c0_41, %c0_42] : memref<1x64xf32, #tpu.memory_space<vmem>>, vector<1x64xf32>
    %57 = vector.broadcast %56 : vector<1x64xf32> to vector<8x64xf32>
    %58 = arith.mulf %55, %57 : vector<8x64xf32>
    %cst_43 = arith.constant dense<0.000000e+00> : vector<8xf32>
    %59 = vector.multi_reduction <add>, %58, %cst_43 [1] : vector<8x64xf32> to vector<8xf32>
    %60 = vector.shape_cast %59 : vector<8xf32> to vector<8x1xf32>
    %c0_44 = arith.constant 0 : index
    %c0_45 = arith.constant 0 : index
    %61 = vector.load %arg19[%c0_44, %c0_45] : memref<1x1xf32, #tpu.memory_space<vmem>>, vector<1x1xf32>
    %62 = vector.broadcast %61 : vector<1x1xf32> to vector<8x1xf32>
    %63 = arith.addf %60, %62 : vector<8x1xf32>
    %c0_46 = arith.constant 0 : index
    %c0_47 = arith.constant 0 : index
    %c0_48 = arith.constant 0 : index
    %64 = vector.load %arg4[%c0_46, %c0_47, %c0_48] : memref<1x8x8xf32, #tpu.memory_space<vmem>>, vector<1x8x8xf32>
    %65 = vector.shape_cast %64 : vector<1x8x8xf32> to vector<8x8xf32>
    %c0_49 = arith.constant 0 : index
    %c0_50 = arith.constant 0 : index
    %c0_51 = arith.constant 0 : index
    %66 = vector.load %arg5[%c0_49, %c0_50, %c0_51] : memref<1x8x256xf32, #tpu.memory_space<vmem>>, vector<1x8x256xf32>
    %67 = vector.shape_cast %66 : vector<1x8x256xf32> to vector<8x256xf32>
    %c0_52 = arith.constant 0 : index
    %c0_53 = arith.constant 0 : index
    %68 = vector.load %arg6[%c0_52, %c0_53] : memref<256x128xf32, #tpu.memory_space<vmem>>, vector<256x128xf32>
    %cst_54 = arith.constant dense<0.000000e+00> : vector<8x128xf32>
    %69 = tpu.matmul %67, %68, %cst_54 {dimension_numbers = #tpu.dot_dimension_numbers<[1], [0], [0], [1], [0, 0, 1, 1], [], []>} : vector<8x256xf32>, vector<256x128xf32>, vector<8x128xf32> -> vector<8x128xf32>
    %c0_55 = arith.constant 0 : index
    %c0_56 = arith.constant 0 : index
    %70 = vector.load %arg7[%c0_55, %c0_56] : memref<1x128xf32, #tpu.memory_space<vmem>>, vector<1x128xf32>
    %71 = vector.broadcast %70 : vector<1x128xf32> to vector<8x128xf32>
    %72 = arith.addf %69, %71 : vector<8x128xf32>
    %cst_57 = arith.constant 0.00999999977 : f32
    %73 = vector.broadcast %cst_57 : f32 to vector<8x128xf32>
    %74 = arith.mulf %73, %72 : vector<8x128xf32>
    %75 = arith.maximumf %72, %74 : vector<8x128xf32>
    %c0_58 = arith.constant 0 : index
    %c0_59 = arith.constant 0 : index
    %76 = vector.load %arg8[%c0_58, %c0_59] : memref<128x128xf32, #tpu.memory_space<vmem>>, vector<128x128xf32>
    %cst_60 = arith.constant dense<0.000000e+00> : vector<8x128xf32>
    %77 = tpu.matmul %75, %76, %cst_60 {dimension_numbers = #tpu.dot_dimension_numbers<[1], [0], [0], [1], [0, 0, 1, 1], [], []>} : vector<8x128xf32>, vector<128x128xf32>, vector<8x128xf32> -> vector<8x128xf32>
    %c0_61 = arith.constant 0 : index
    %c0_62 = arith.constant 0 : index
    %78 = vector.load %arg9[%c0_61, %c0_62] : memref<1x128xf32, #tpu.memory_space<vmem>>, vector<1x128xf32>
    %79 = vector.broadcast %78 : vector<1x128xf32> to vector<8x128xf32>
    %80 = arith.addf %77, %79 : vector<8x128xf32>
    %cst_63 = arith.constant 0.00999999977 : f32
    %81 = vector.broadcast %cst_63 : f32 to vector<8x128xf32>
    %82 = arith.mulf %81, %80 : vector<8x128xf32>
    %83 = arith.maximumf %80, %82 : vector<8x128xf32>
    %c0_64 = arith.constant 0 : index
    %c0_65 = arith.constant 0 : index
    %84 = vector.load %arg10[%c0_64, %c0_65] : memref<8x128xf32, #tpu.memory_space<vmem>>, vector<8x128xf32>
    %cst_66 = arith.constant dense<0.000000e+00> : vector<8x128xf32>
    %85 = tpu.matmul %65, %84, %cst_66 {dimension_numbers = #tpu.dot_dimension_numbers<[1], [0], [0], [1], [0, 0, 1, 1], [], []>} : vector<8x8xf32>, vector<8x128xf32>, vector<8x128xf32> -> vector<8x128xf32>
    %c0_67 = arith.constant 0 : index
    %c0_68 = arith.constant 0 : index
    %86 = vector.load %arg11[%c0_67, %c0_68] : memref<1x128xf32, #tpu.memory_space<vmem>>, vector<1x128xf32>
    %87 = vector.broadcast %86 : vector<1x128xf32> to vector<8x128xf32>
    %88 = arith.addf %85, %87 : vector<8x128xf32>
    %cst_69 = arith.constant 0.00999999977 : f32
    %89 = vector.broadcast %cst_69 : f32 to vector<8x128xf32>
    %90 = arith.mulf %89, %88 : vector<8x128xf32>
    %91 = arith.maximumf %88, %90 : vector<8x128xf32>
    %c0_70 = arith.constant 0 : index
    %c0_71 = arith.constant 0 : index
    %92 = vector.load %arg12[%c0_70, %c0_71] : memref<128x128xf32, #tpu.memory_space<vmem>>, vector<128x128xf32>
    %cst_72 = arith.constant dense<0.000000e+00> : vector<8x128xf32>
    %93 = tpu.matmul %91, %92, %cst_72 {dimension_numbers = #tpu.dot_dimension_numbers<[1], [0], [0], [1], [0, 0, 1, 1], [], []>} : vector<8x128xf32>, vector<128x128xf32>, vector<8x128xf32> -> vector<8x128xf32>
    %c0_73 = arith.constant 0 : index
    %c0_74 = arith.constant 0 : index
    %94 = vector.load %arg13[%c0_73, %c0_74] : memref<1x128xf32, #tpu.memory_space<vmem>>, vector<1x128xf32>
    %95 = vector.broadcast %94 : vector<1x128xf32> to vector<8x128xf32>
    %96 = arith.addf %93, %95 : vector<8x128xf32>
    %cst_75 = arith.constant 0.00999999977 : f32
    %97 = vector.broadcast %cst_75 : f32 to vector<8x128xf32>
    %98 = arith.mulf %97, %96 : vector<8x128xf32>
    %99 = arith.maximumf %96, %98 : vector<8x128xf32>
    %100 = tpu.concatenate %99, %83 in 1 : vector<8x128xf32>, vector<8x128xf32> -> vector<8x256xf32>
    %c0_76 = arith.constant 0 : index
    %c0_77 = arith.constant 0 : index
    %101 = vector.load %arg14[%c0_76, %c0_77] : memref<256x128xf32, #tpu.memory_space<vmem>>, vector<256x128xf32>
    %cst_78 = arith.constant dense<0.000000e+00> : vector<8x128xf32>
    %102 = tpu.matmul %100, %101, %cst_78 {dimension_numbers = #tpu.dot_dimension_numbers<[1], [0], [0], [1], [0, 0, 1, 1], [], []>} : vector<8x256xf32>, vector<256x128xf32>, vector<8x128xf32> -> vector<8x128xf32>
    %c0_79 = arith.constant 0 : index
    %c0_80 = arith.constant 0 : index
    %103 = vector.load %arg15[%c0_79, %c0_80] : memref<1x128xf32, #tpu.memory_space<vmem>>, vector<1x128xf32>
    %104 = vector.broadcast %103 : vector<1x128xf32> to vector<8x128xf32>
    %105 = arith.addf %102, %104 : vector<8x128xf32>
    %cst_81 = arith.constant 0.00999999977 : f32
    %106 = vector.broadcast %cst_81 : f32 to vector<8x128xf32>
    %107 = arith.mulf %106, %105 : vector<8x128xf32>
    %108 = arith.maximumf %105, %107 : vector<8x128xf32>
    %c0_82 = arith.constant 0 : index
    %c0_83 = arith.constant 0 : index
    %109 = vector.load %arg16[%c0_82, %c0_83] : memref<128x64xf32, #tpu.memory_space<vmem>>, vector<128x64xf32>
    %cst_84 = arith.constant dense<0.000000e+00> : vector<8x64xf32>
    %110 = tpu.matmul %108, %109, %cst_84 {dimension_numbers = #tpu.dot_dimension_numbers<[1], [0], [0], [1], [0, 0, 1, 1], [], []>} : vector<8x128xf32>, vector<128x64xf32>, vector<8x64xf32> -> vector<8x64xf32>
    %c0_85 = arith.constant 0 : index
    %c0_86 = arith.constant 0 : index
    %111 = vector.load %arg17[%c0_85, %c0_86] : memref<1x64xf32, #tpu.memory_space<vmem>>, vector<1x64xf32>
    %112 = vector.broadcast %111 : vector<1x64xf32> to vector<8x64xf32>
    %113 = arith.addf %110, %112 : vector<8x64xf32>
    %cst_87 = arith.constant 0.00999999977 : f32
    %114 = vector.broadcast %cst_87 : f32 to vector<8x64xf32>
    %115 = arith.mulf %114, %113 : vector<8x64xf32>
    %116 = arith.maximumf %113, %115 : vector<8x64xf32>
    %c0_88 = arith.constant 0 : index
    %c0_89 = arith.constant 0 : index
    %117 = vector.load %arg18[%c0_88, %c0_89] : memref<1x64xf32, #tpu.memory_space<vmem>>, vector<1x64xf32>
    %118 = vector.broadcast %117 : vector<1x64xf32> to vector<8x64xf32>
    %119 = arith.mulf %116, %118 : vector<8x64xf32>
    %cst_90 = arith.constant dense<0.000000e+00> : vector<8xf32>
    %120 = vector.multi_reduction <add>, %119, %cst_90 [1] : vector<8x64xf32> to vector<8xf32>
    %121 = vector.shape_cast %120 : vector<8xf32> to vector<8x1xf32>
    %c0_91 = arith.constant 0 : index
    %c0_92 = arith.constant 0 : index
    %122 = vector.load %arg19[%c0_91, %c0_92] : memref<1x1xf32, #tpu.memory_space<vmem>>, vector<1x1xf32>
    %123 = vector.broadcast %122 : vector<1x1xf32> to vector<8x1xf32>
    %124 = arith.addf %121, %123 : vector<8x1xf32>
    %c0_93 = arith.constant 0 : index
    %c0_94 = arith.constant 0 : index
    %c0_95 = arith.constant 0 : index
    %125 = vector.load %arg20[%c0_93, %c0_94, %c0_95] : memref<1x1x1xf32, #tpu.memory_space<vmem>>, vector<1x1x1xf32>
    %126 = vector.shape_cast %125 : vector<1x1x1xf32> to vector<1x1xf32>
    %cst_96 = arith.constant dense<0.000000e+00> : vector<1xf32>
    %127 = vector.multi_reduction <add>, %63, %cst_96 [0] : vector<8x1xf32> to vector<1xf32>
    %128 = vector.shape_cast %127 : vector<1xf32> to vector<1x1xf32>
    %129 = arith.addf %126, %128 : vector<1x1xf32>
    %c0_97 = arith.constant 0 : index
    %c0_98 = arith.constant 0 : index
    %c0_99 = arith.constant 0 : index
    %130 = vector.load %arg20[%c0_97, %c0_98, %c0_99] : memref<1x1x1xf32, #tpu.memory_space<vmem>>, vector<1x1x1xf32>
    %131 = vector.shape_cast %130 : vector<1x1x1xf32> to vector<1x1xf32>
    %132 = vector.shape_cast %129 : vector<1x1xf32> to vector<1x1x1xf32>
    tpu.vector_store %arg20[%c0_97, %c0_98, %c0_99], %132 {strides = array<i32>} : memref<1x1x1xf32, #tpu.memory_space<vmem>>, vector<1x1x1xf32>,
    %c0_100 = arith.constant 0 : index
    %c0_101 = arith.constant 0 : index
    %c0_102 = arith.constant 0 : index
    %133 = vector.load %arg21[%c0_100, %c0_101, %c0_102] : memref<1x1x1xf32, #tpu.memory_space<vmem>>, vector<1x1x1xf32>
    %134 = vector.shape_cast %133 : vector<1x1x1xf32> to vector<1x1xf32>
    %135 = math.absf %63 : vector<8x1xf32>
    %cst_103 = arith.constant dense<0.000000e+00> : vector<1xf32>
    %136 = vector.multi_reduction <add>, %135, %cst_103 [0] : vector<8x1xf32> to vector<1xf32>
    %137 = vector.shape_cast %136 : vector<1xf32> to vector<1x1xf32>
    %138 = arith.addf %134, %137 : vector<1x1xf32>
    %c0_104 = arith.constant 0 : index
    %c0_105 = arith.constant 0 : index
    %c0_106 = arith.constant 0 : index
    %139 = vector.load %arg21[%c0_104, %c0_105, %c0_106] : memref<1x1x1xf32, #tpu.memory_space<vmem>>, vector<1x1x1xf32>
    %140 = vector.shape_cast %139 : vector<1x1x1xf32> to vector<1x1xf32>
    %141 = vector.shape_cast %138 : vector<1x1xf32> to vector<1x1x1xf32>
    tpu.vector_store %arg21[%c0_104, %c0_105, %c0_106], %141 {strides = array<i32>} : memref<1x1x1xf32, #tpu.memory_space<vmem>>, vector<1x1x1xf32>,
    %c0_107 = arith.constant 0 : index
    %c0_108 = arith.constant 0 : index
    %c0_109 = arith.constant 0 : index
    %142 = vector.load %arg22[%c0_107, %c0_108, %c0_109] : memref<1x1x1xf32, #tpu.memory_space<vmem>>, vector<1x1x1xf32>
    %143 = vector.shape_cast %142 : vector<1x1x1xf32> to vector<1x1xf32>
    %cst_110 = arith.constant dense<0.000000e+00> : vector<1xf32>
    %144 = vector.multi_reduction <add>, %124, %cst_110 [0] : vector<8x1xf32> to vector<1xf32>
    %145 = vector.shape_cast %144 : vector<1xf32> to vector<1x1xf32>
    %146 = arith.addf %143, %145 : vector<1x1xf32>
    %c0_111 = arith.constant 0 : index
    %c0_112 = arith.constant 0 : index
    %c0_113 = arith.constant 0 : index
    %147 = vector.load %arg22[%c0_111, %c0_112, %c0_113] : memref<1x1x1xf32, #tpu.memory_space<vmem>>, vector<1x1x1xf32>
    %148 = vector.shape_cast %147 : vector<1x1x1xf32> to vector<1x1xf32>
    %149 = vector.shape_cast %146 : vector<1x1xf32> to vector<1x1x1xf32>
    tpu.vector_store %arg22[%c0_111, %c0_112, %c0_113], %149 {strides = array<i32>} : memref<1x1x1xf32, #tpu.memory_space<vmem>>, vector<1x1x1xf32>,
    %c0_114 = arith.constant 0 : index
    %c0_115 = arith.constant 0 : index
    %c0_116 = arith.constant 0 : index
    %150 = vector.load %arg23[%c0_114, %c0_115, %c0_116] : memref<1x1x1xf32, #tpu.memory_space<vmem>>, vector<1x1x1xf32>
    %151 = vector.shape_cast %150 : vector<1x1x1xf32> to vector<1x1xf32>
    %152 = math.absf %124 : vector<8x1xf32>
    %cst_117 = arith.constant dense<0.000000e+00> : vector<1xf32>
    %153 = vector.multi_reduction <add>, %152, %cst_117 [0] : vector<8x1xf32> to vector<1xf32>
    %154 = vector.shape_cast %153 : vector<1xf32> to vector<1x1xf32>
    %155 = arith.addf %151, %154 : vector<1x1xf32>
    %c0_118 = arith.constant 0 : index
    %c0_119 = arith.constant 0 : index
    %c0_120 = arith.constant 0 : index
    %156 = vector.load %arg23[%c0_118, %c0_119, %c0_120] : memref<1x1x1xf32, #tpu.memory_space<vmem>>, vector<1x1x1xf32>
    %157 = vector.shape_cast %156 : vector<1x1x1xf32> to vector<1x1xf32>
    %158 = vector.shape_cast %155 : vector<1x1xf32> to vector<1x1x1xf32>
    tpu.vector_store %arg23[%c0_118, %c0_119, %c0_120], %158 {strides = array<i32>} : memref<1x1x1xf32, #tpu.memory_space<vmem>>, vector<1x1x1xf32>,
    return
  }
  func.func @transform_0(%arg0: i32, %arg1: i32) -> (i32, i32, i32) {
    %c0_i32 = arith.constant 0 : i32
    %c0_i32_0 = arith.constant 0 : i32
    return %arg0, %arg1, %c0_i32 : i32, i32, i32
  }
  func.func @transform_1(%arg0: i32, %arg1: i32) -> (i32, i32, i32) {
    %c0_i32 = arith.constant 0 : i32
    %c0_i32_0 = arith.constant 0 : i32
    return %arg0, %arg1, %c0_i32 : i32, i32, i32
  }
  func.func @transform_2(%arg0: i32, %arg1: i32) -> (i32, i32, i32) {
    %c0_i32 = arith.constant 0 : i32
    %c0_i32_0 = arith.constant 0 : i32
    return %arg0, %arg1, %c0_i32 : i32, i32, i32
  }
  func.func @transform_3(%arg0: i32, %arg1: i32) -> (i32, i32, i32) {
    %c0_i32 = arith.constant 0 : i32
    %c0_i32_0 = arith.constant 0 : i32
    return %arg0, %arg1, %c0_i32 : i32, i32, i32
  }
  func.func @transform_4(%arg0: i32, %arg1: i32) -> (i32, i32) {
    %c0_i32 = arith.constant 0 : i32
    %c0_i32_0 = arith.constant 0 : i32
    %c0_i32_1 = arith.constant 0 : i32
    return %c0_i32, %c0_i32_0 : i32, i32
  }
  func.func @transform_5(%arg0: i32, %arg1: i32) -> (i32, i32) {
    %c0_i32 = arith.constant 0 : i32
    %c0_i32_0 = arith.constant 0 : i32
    %c0_i32_1 = arith.constant 0 : i32
    return %c0_i32, %c0_i32_0 : i32, i32
  }
  func.func @transform_6(%arg0: i32, %arg1: i32) -> (i32, i32) {
    %c0_i32 = arith.constant 0 : i32
    %c0_i32_0 = arith.constant 0 : i32
    %c0_i32_1 = arith.constant 0 : i32
    return %c0_i32, %c0_i32_0 : i32, i32
  }
  func.func @transform_7(%arg0: i32, %arg1: i32) -> (i32, i32) {
    %c0_i32 = arith.constant 0 : i32
    %c0_i32_0 = arith.constant 0 : i32
    %c0_i32_1 = arith.constant 0 : i32
    return %c0_i32, %c0_i32_0 : i32, i32
  }
  func.func @transform_8(%arg0: i32, %arg1: i32) -> (i32, i32) {
    %c0_i32 = arith.constant 0 : i32
    %c0_i32_0 = arith.constant 0 : i32
    %c0_i32_1 = arith.constant 0 : i32
    return %c0_i32, %c0_i32_0 : i32, i32
  }
  func.func @transform_9(%arg0: i32, %arg1: i32) -> (i32, i32) {
    %c0_i32 = arith.constant 0 : i32
    %c0_i32_0 = arith.constant 0 : i32
    %c0_i32_1 = arith.constant 0 : i32
    return %c0_i32, %c0_i32_0 : i32, i32
  }
  func.func @transform_10(%arg0: i32, %arg1: i32) -> (i32, i32) {
    %c0_i32 = arith.constant 0 : i32
    %c0_i32_0 = arith.constant 0 : i32
    %c0_i32_1 = arith.constant 0 : i32
    return %c0_i32, %c0_i32_0 : i32, i32
  }
  func.func @transform_11(%arg0: i32, %arg1: i32) -> (i32, i32) {
    %c0_i32 = arith.constant 0 : i32
    %c0_i32_0 = arith.constant 0 : i32
    %c0_i32_1 = arith.constant 0 : i32
    return %c0_i32, %c0_i32_0 : i32, i32
  }
  func.func @transform_12(%arg0: i32, %arg1: i32) -> (i32, i32) {
    %c0_i32 = arith.constant 0 : i32
    %c0_i32_0 = arith.constant 0 : i32
    %c0_i32_1 = arith.constant 0 : i32
    return %c0_i32, %c0_i32_0 : i32, i32
  }
  func.func @transform_13(%arg0: i32, %arg1: i32) -> (i32, i32) {
    %c0_i32 = arith.constant 0 : i32
    %c0_i32_0 = arith.constant 0 : i32
    %c0_i32_1 = arith.constant 0 : i32
    return %c0_i32, %c0_i32_0 : i32, i32
  }
  func.func @transform_14(%arg0: i32, %arg1: i32) -> (i32, i32) {
    %c0_i32 = arith.constant 0 : i32
    %c0_i32_0 = arith.constant 0 : i32
    %c0_i32_1 = arith.constant 0 : i32
    return %c0_i32, %c0_i32_0 : i32, i32
  }
  func.func @transform_15(%arg0: i32, %arg1: i32) -> (i32, i32) {
    %c0_i32 = arith.constant 0 : i32
    %c0_i32_0 = arith.constant 0 : i32
    %c0_i32_1 = arith.constant 0 : i32
    return %c0_i32, %c0_i32_0 : i32, i32
  }
  func.func @transform_16(%arg0: i32, %arg1: i32) -> (i32, i32) {
    %c0_i32 = arith.constant 0 : i32
    %c0_i32_0 = arith.constant 0 : i32
    %c0_i32_1 = arith.constant 0 : i32
    return %c0_i32, %c0_i32_0 : i32, i32
  }
  func.func @transform_17(%arg0: i32, %arg1: i32) -> (i32, i32) {
    %c0_i32 = arith.constant 0 : i32
    %c0_i32_0 = arith.constant 0 : i32
    %c0_i32_1 = arith.constant 0 : i32
    return %c0_i32, %c0_i32_0 : i32, i32
  }
  func.func @transform_18(%arg0: i32, %arg1: i32) -> (i32, i32, i32) {
    %c0_i32 = arith.constant 0 : i32
    %c0_i32_0 = arith.constant 0 : i32
    %c0_i32_1 = arith.constant 0 : i32
    return %arg0, %c0_i32, %c0_i32_0 : i32, i32, i32
  }
  func.func @transform_19(%arg0: i32, %arg1: i32) -> (i32, i32, i32) {
    %c0_i32 = arith.constant 0 : i32
    %c0_i32_0 = arith.constant 0 : i32
    %c0_i32_1 = arith.constant 0 : i32
    return %arg0, %c0_i32, %c0_i32_0 : i32, i32, i32
  }
  func.func @transform_20(%arg0: i32, %arg1: i32) -> (i32, i32, i32) {
    %c0_i32 = arith.constant 0 : i32
    %c0_i32_0 = arith.constant 0 : i32
    %c0_i32_1 = arith.constant 0 : i32
    return %arg0, %c0_i32, %c0_i32_0 : i32, i32, i32
  }
  func.func @transform_21(%arg0: i32, %arg1: i32) -> (i32, i32, i32) {
    %c0_i32 = arith.constant 0 : i32
    %c0_i32_0 = arith.constant 0 : i32
    %c0_i32_1 = arith.constant 0 : i32
    return %arg0, %c0_i32, %c0_i32_0 : i32, i32, i32
  }
}

</mosaic_0001>

<llo_original>
// kernel: reward_net_forward.1
$region0: #{reward_net_forward.1}
  #allocation0 [shape = 'u32[]', space=smem, size = 0x4, offset = 0x4, fixed_abs, tag = 'smem constant byte address 0x4 - core index']
  #allocation1 [shape = 'u32[72,128]{1,0:T(1,128)}', space=vmem, size = 0x9000, scoped, tag = 'internal scratch']
  #allocation2 [shape = 'f32[1,1]{1,0:T(1,128)S(1)}', space=vmem, size = 0x200, scoped, tag = 'scoped memory for reward_net_forward.1']
  %s0 = inlined_call_operand.vmem [shape: f32[2,8,8], index: 0, kind: input, shape index: {}]
  %s1 = inlined_call_operand.vmem [shape: f32[2,8,256], index: 1, kind: input, shape index: {}]
  %s2 = inlined_call_operand.vmem [shape: f32[2,8,8], index: 2, kind: input, shape index: {}]
  %s3 = inlined_call_operand.vmem [shape: f32[2,8,256], index: 3, kind: input, shape index: {}]
  %s4 = inlined_call_operand.vmem [shape: f32[256,128], index: 4, kind: input, shape index: {}]
  %s5 = inlined_call_operand.hbm [shape: f32[1,128], index: 5, kind: input, shape index: {}]
  %s6 = inlined_call_operand.hbm [shape: f32[128,128], index: 6, kind: input, shape index: {}]
  %s7 = inlined_call_operand.hbm [shape: f32[1,128], index: 7, kind: input, shape index: {}]
  %s8 = inlined_call_operand.vmem [shape: f32[8,128], index: 8, kind: input, shape index: {}]
  %s9 = inlined_call_operand.hbm [shape: f32[1,128], index: 9, kind: input, shape index: {}]
  %s10 = inlined_call_operand.hbm [shape: f32[128,128], index: 10, kind: input, shape index: {}]
  %s11 = inlined_call_operand.hbm [shape: f32[1,128], index: 11, kind: input, shape index: {}]
  %s12 = inlined_call_operand.hbm [shape: f32[256,128], index: 12, kind: input, shape index: {}]
  %s13 = inlined_call_operand.hbm [shape: f32[1,128], index: 13, kind: input, shape index: {}]
  %s14 = inlined_call_operand.vmem [shape: f32[128,64], index: 14, kind: input, shape index: {}]
  %s15 = inlined_call_operand.hbm [shape: f32[1,64], index: 15, kind: input, shape index: {}]
  %s16 = inlined_call_operand.hbm [shape: f32[1,64], index: 16, kind: input, shape index: {}]
  %s17 = inlined_call_operand.<no memory space> [shape: f32[1,1], index: 17, kind: input, shape index: {}]
  %s18 = inlined_call_operand.vmem [shape: f32[2,1,1], index: 18, kind: output, shape index: {0}]
  %s19 = inlined_call_operand.vmem [shape: f32[2,1,1], index: 19, kind: output, shape index: {1}]
  %s20 = inlined_call_operand.vmem [shape: f32[2,1,1], index: 20, kind: output, shape index: {2}]
  %s21 = inlined_call_operand.vmem [shape: f32[2,1,1], index: 21, kind: output, shape index: {3}]
  %22 = xla_tuple %s18, %s19, %s20, %s21
  %s23 = sld [smem:[#allocation0]]
  $region173: #{reward_net_forward.1} parent=0
    _
  %s25 = ssub.s32 1, %s23
  %s26 = scalar_select 0, %s25, %s23
  %v27 = vstv %s17
  %28 = vst [vmem:[#allocation2] sm:$0x1] %v27
  $region1: #{reward_net_forward.1} parent=0
    #allocation3 [shape = 'u8[512]{0}', space=vmem, size = 0x400, scoped, tag = 'input window, operand 5, single buffered']
    #allocation4 [shape = 's32[2]{0}', space=sflag, size = 0x8, scoped, tag = 'scoped memory for reward_net_forward.1']
    #allocation5 [shape = 'u8[65536]{0}', space=vmem, size = 0x10000, scoped, tag = 'input window, operand 6, single buffered']
    #allocation6 [shape = 's32[1]{0}', space=sflag, size = 0x4, scoped, tag = 'scoped memory for reward_net_forward.1']
    #allocation7 [shape = 'u8[512]{0}', space=vmem, size = 0x400, scoped, tag = 'input window, operand 7, single buffered']
    #allocation8 [shape = 'u8[512]{0}', space=vmem, size = 0x400, scoped, tag = 'input window, operand 9, single buffered']
    #allocation9 [shape = 's32[1]{0}', space=sflag, size = 0x4, scoped, tag = 'scoped memory for reward_net_forward.1']
    #allocation10 [shape = 'u8[65536]{0}', space=vmem, size = 0x10000, scoped, tag = 'input window, operand 10, single buffered']
    #allocation11 [shape = 'u8[512]{0}', space=vmem, size = 0x400, scoped, tag = 'input window, operand 11, single buffered']
    #allocation12 [shape = 's32[1]{0}', space=sflag, size = 0x4, scoped, tag = 'scoped memory for reward_net_forward.1']
    #allocation13 [shape = 'u8[131072]{0}', space=vmem, size = 0x20000, scoped, tag = 'input window, operand 12, single buffered']
    #allocation14 [shape = 'u8[512]{0}', space=vmem, size = 0x400, scoped, tag = 'input window, operand 13, single buffered']
    #allocation15 [shape = 's32[1]{0}', space=sflag, size = 0x4, scoped, tag = 'scoped memory for reward_net_forward.1']
    #allocation16 [shape = 'u8[512]{0}', space=vmem, size = 0x400, scoped, tag = 'input window, operand 15, single buffered']
    #allocation17 [shape = 'u8[512]{0}', space=vmem, size = 0x400, scoped, tag = 'input window, operand 16, single buffered']
    #allocation18 [shape = 's32[1]{0}', space=sflag, size = 0x4, scoped, tag = 'scoped memory for reward_net_forward.1']
    %29 = vsyncpa [#allocation4], 0
    %30 = vsyncpa [#allocation6], 0
    %31 = vsyncpa [#allocation9], 0
    %32 = vsyncpa [#allocation12], 0
    %33 = vsyncpa [#allocation15], 0
    %34 = vsyncpa [#allocation18], 0
    loop: start=0, step=1, limit=4
    $region2: #{reward_net_forward.1} parent=1 // loop_pre_header
      _
    $region3: #{reward_net_forward.1} parent=1 // loop_header
      %s36 = sphi 0, %s40
      %p37 = scmp.ge.s32.totalorder %s36, 4
      %s43 = sphi 0, %s55
      %s44 = sphi 0, %s51
      %s45 = sphi 0, %s43
      %s46 = sphi 0, %s44
      %s47 = sphi 0, %s45
      %s48 = sphi 0, %s46
      %s60 = sphi 0, %s62
      %s63 = sphi 0, %s60
      %s64 = sphi 0, %s63
      %s80 = sphi 0, %s64
      %s88 = sphi 0, %s90
      %s91 = sphi 0, %s88
      %s92 = sphi 0, %s91
      %s108 = sphi 0, %s92
      %s116 = sphi 0, %s118
      %s119 = sphi 0, %s116
      %s120 = sphi 0, %s119
      %s136 = sphi 0, %s120
      %s144 = sphi 0, %s146
      %s147 = sphi 0, %s144
      %s148 = sphi 0, %s147
      %s164 = sphi 0, %s148
      %s168 = sphi 0, %s168
      %s170 = sphi 0, %s168
      %s171 = sphi 0, %s170
      %s185 = sphi 0, %s171
      %s189 = sphi 0, %s189
      %s191 = sphi 0, %s189
      %s192 = sphi 0, %s191
      %s206 = sphi 0, %s192
      %s210 = sphi 0, %s210
      %s212 = sphi 0, %s210
      %s213 = sphi 0, %s212
      %s227 = sphi 0, %s213
      %s231 = sphi 0, %s231
      %s233 = sphi 0, %s231
      %s234 = sphi 0, %s233
      %s248 = sphi 0, %s234
      %s252 = sphi 0, %s252
      %s254 = sphi 0, %s252
      %s255 = sphi 0, %s254
      %s269 = sphi 0, %s255
      %s273 = sphi 0, %s273
      %s275 = sphi 0, %s273
      %s276 = sphi 0, %s275
      %s290 = sphi 0, %s276
      %s294 = sphi 0, %s294
      %s296 = sphi 0, %s294
      %s297 = sphi 0, %s296
      %s311 = sphi 0, %s297
      %s315 = sphi 0, %s315
      %s317 = sphi 0, %s315
      %s318 = sphi 0, %s317
      %s332 = sphi 0, %s318
      %s336 = sphi 0, %s336
      %s338 = sphi 0, %s336
      %s339 = sphi 0, %s338
      %s353 = sphi 0, %s339
      %s357 = sphi 0, %s357
      %s359 = sphi 0, %s357
      %s360 = sphi 0, %s359
      %s374 = sphi 0, %s360
      %s378 = sphi 0, %s378
      %s380 = sphi 0, %s378
      %s381 = sphi 0, %s380
      %s395 = sphi 0, %s381
      %s399 = sphi 0, %s399
      %s401 = sphi 0, %s399
      %s402 = sphi 0, %s401
      %s416 = sphi 0, %s402
      %s420 = sphi 0, %s420
      %s422 = sphi 0, %s420
      %s423 = sphi 0, %s422
      %s437 = sphi 0, %s423
      %s441 = sphi 0, %s441
      %s443 = sphi 0, %s441
      %s444 = sphi 0, %s443
      %s458 = sphi 0, %s444
      %s464 = sphi 0, %s466
      %s467 = sphi 0, %s464
      %s468 = sphi 0, %s467
      %s484 = sphi 0, %s468
      %s490 = sphi 0, %s492
      %s493 = sphi 0, %s490
      %s494 = sphi 0, %s493
      %s510 = sphi 0, %s494
      %s516 = sphi 0, %s518
      %s519 = sphi 0, %s516
      %s520 = sphi 0, %s519
      %s536 = sphi 0, %s520
      %s542 = sphi 0, %s544
      %s545 = sphi 0, %s542
      %s546 = sphi 0, %s545
      %s562 = sphi 0, %s546
    $region4: #{reward_net_forward.1} parent=1 // loop_header_branch
      %39 = sbr.rel (%p37) target = $region8
    $region5: #{reward_net_forward.1} parent=1 // loop_body
      %s41 = ssub.s32 %s36, 1
      %s42 = ssub.s32 %s36, 2
      %s49 = sadd.s32 1, %s44
      %p50 = scmp.ge.s32.totalorder %s49, 1
      %s51 = scalar_select %p50, 0, %s49
      %s52 = sadd.s32 1, %s43
      %s53 = scalar_select %p50, %s52, %s43
      %p54 = scmp.ge.s32.totalorder %s53, 2
      %s55 = scalar_select %p54, 0, %s53
      %s56 = ssub.s32 %s43, %s55
      %s57 = ssub.s32 %s44, %s51
      %s58 = sor.u32 %s56, %s57
      %p59 = scmp.eq.s32.totalorder %s58, 0
      %s61 = sadd.s32 %s60, 1
      %s62 = scalar_select %p59, %s60, %s61
      %p65 = pneg %p59
      %p66 = scmp.eq.s32.totalorder %s36, 1
      %p67 = por %p65, %p66
      %p68 = scmp.ne.s32.totalorder %s60, %s63
      %p69 = scmp.eq.s32.totalorder %s36, 0
      %p70 = por %p68, %p69
      %p71 = scmp.ne.s32.totalorder %s60, %s63
      %p72 = scmp.eq.s32.totalorder %s41, 1
      %p73 = por %p71, %p72
      %p74 = scmp.ne.s32.totalorder %s63, %s64
      %p75 = scmp.eq.s32.totalorder %s41, 0
      %p76 = por %p74, %p75
      %p77 = scmp.ne.s32.totalorder %s63, %s64
      %p78 = scmp.eq.s32.totalorder %s42, 1
      %p79 = por %p77, %p78
      %p81 = scmp.ne.s32.totalorder %s64, %s80
      %p82 = scmp.eq.s32.totalorder %s42, 0
      %p83 = por %p81, %p82
      %s84 = ssub.s32 %s43, %s55
      %s85 = ssub.s32 %s44, %s51
      %s86 = sor.u32 %s84, %s85
      %p87 = scmp.eq.s32.totalorder %s86, 0
      %s89 = sadd.s32 %s88, 1
      %s90 = scalar_select %p87, %s88, %s89
      %p93 = pneg %p87
      %p94 = scmp.eq.s32.totalorder %s36, 1
      %p95 = por %p93, %p94
      %p96 = scmp.ne.s32.totalorder %s88, %s91
      %p97 = scmp.eq.s32.totalorder %s36, 0
      %p98 = por %p96, %p97
      %p99 = scmp.ne.s32.totalorder %s88, %s91
      %p100 = scmp.eq.s32.totalorder %s41, 1
      %p101 = por %p99, %p100
      %p102 = scmp.ne.s32.totalorder %s91, %s92
      %p103 = scmp.eq.s32.totalorder %s41, 0
      %p104 = por %p102, %p103
      %p105 = scmp.ne.s32.totalorder %s91, %s92
      %p106 = scmp.eq.s32.totalorder %s42, 1
      %p107 = por %p105, %p106
      %p109 = scmp.ne.s32.totalorder %s92, %s108
      %p110 = scmp.eq.s32.totalorder %s42, 0
      %p111 = por %p109, %p110
      %s112 = ssub.s32 %s43, %s55
      %s113 = ssub.s32 %s44, %s51
      %s114 = sor.u32 %s112, %s113
      %p115 = scmp.eq.s32.totalorder %s114, 0
      %s117 = sadd.s32 %s116, 1
      %s118 = scalar_select %p115, %s116, %s117
      %p121 = pneg %p115
      %p122 = scmp.eq.s32.totalorder %s36, 1
      %p123 = por %p121, %p122
      %p124 = scmp.ne.s32.totalorder %s116, %s119
      %p125 = scmp.eq.s32.totalorder %s36, 0
      %p126 = por %p124, %p125
      %p127 = scmp.ne.s32.totalorder %s116, %s119
      %p128 = scmp.eq.s32.totalorder %s41, 1
      %p129 = por %p127, %p128
      %p130 = scmp.ne.s32.totalorder %s119, %s120
      %p131 = scmp.eq.s32.totalorder %s41, 0
      %p132 = por %p130, %p131
      %p133 = scmp.ne.s32.totalorder %s119, %s120
      %p134 = scmp.eq.s32.totalorder %s42, 1
      %p135 = por %p133, %p134
      %p137 = scmp.ne.s32.totalorder %s120, %s136
      %p138 = scmp.eq.s32.totalorder %s42, 0
      %p139 = por %p137, %p138
      %s140 = ssub.s32 %s43, %s55
      %s141 = ssub.s32 %s44, %s51
      %s142 = sor.u32 %s140, %s141
      %p143 = scmp.eq.s32.totalorder %s142, 0
      %s145 = sadd.s32 %s144, 1
      %s146 = scalar_select %p143, %s144, %s145
      %p149 = pneg %p143
      %p150 = scmp.eq.s32.totalorder %s36, 1
      %p151 = por %p149, %p150
      %p152 = scmp.ne.s32.totalorder %s144, %s147
      %p153 = scmp.eq.s32.totalorder %s36, 0
      %p154 = por %p152, %p153
      %p155 = scmp.ne.s32.totalorder %s144, %s147
      %p156 = scmp.eq.s32.totalorder %s41, 1
      %p157 = por %p155, %p156
      %p158 = scmp.ne.s32.totalorder %s147, %s148
      %p159 = scmp.eq.s32.totalorder %s41, 0
      %p160 = por %p158, %p159
      %p161 = scmp.ne.s32.totalorder %s147, %s148
      %p162 = scmp.eq.s32.totalorder %s42, 1
      %p163 = por %p161, %p162
      %p165 = scmp.ne.s32.totalorder %s148, %s164
      %p166 = scmp.eq.s32.totalorder %s42, 0
      %p167 = por %p165, %p166
      %s169 = sadd.s32 %s168, 1
      %p172 = scmp.eq.s32.totalorder %s36, 1
      %p173 = scmp.ne.s32.totalorder %s168, %s170
      %p174 = scmp.eq.s32.totalorder %s36, 0
      %p175 = por %p173, %p174
      %p176 = scmp.ne.s32.totalorder %s168, %s170
      %p177 = scmp.eq.s32.totalorder %s41, 1
      %p178 = por %p176, %p177
      %p179 = scmp.ne.s32.totalorder %s170, %s171
      %p180 = scmp.eq.s32.totalorder %s41, 0
      %p181 = por %p179, %p180
      %p182 = scmp.ne.s32.totalorder %s170, %s171
      %p183 = scmp.eq.s32.totalorder %s42, 1
      %p184 = por %p182, %p183
      %p186 = scmp.ne.s32.totalorder %s171, %s185
      %p187 = scmp.eq.s32.totalorder %s42, 0
      %p188 = por %p186, %p187
      %s190 = sadd.s32 %s189, 1
      %p193 = scmp.eq.s32.totalorder %s36, 1
      %p194 = scmp.ne.s32.totalorder %s189, %s191
      %p195 = scmp.eq.s32.totalorder %s36, 0
      %p196 = por %p194, %p195
      %p197 = scmp.ne.s32.totalorder %s189, %s191
      %p198 = scmp.eq.s32.totalorder %s41, 1
      %p199 = por %p197, %p198
      %p200 = scmp.ne.s32.totalorder %s191, %s192
      %p201 = scmp.eq.s32.totalorder %s41, 0
      %p202 = por %p200, %p201
      %p203 = scmp.ne.s32.totalorder %s191, %s192
      %p204 = scmp.eq.s32.totalorder %s42, 1
      %p205 = por %p203, %p204
      %p207 = scmp.ne.s32.totalorder %s192, %s206
      %p208 = scmp.eq.s32.totalorder %s42, 0
      %p209 = por %p207, %p208
      %s211 = sadd.s32 %s210, 1
      %p214 = scmp.eq.s32.totalorder %s36, 1
      %p215 = scmp.ne.s32.totalorder %s210, %s212
      %p216 = scmp.eq.s32.totalorder %s36, 0
      %p217 = por %p215, %p216
      %p218 = scmp.ne.s32.totalorder %s210, %s212
      %p219 = scmp.eq.s32.totalorder %s41, 1
      %p220 = por %p218, %p219
      %p221 = scmp.ne.s32.totalorder %s212, %s213
      %p222 = scmp.eq.s32.totalorder %s41, 0
      %p223 = por %p221, %p222
      %p224 = scmp.ne.s32.totalorder %s212, %s213
      %p225 = scmp.eq.s32.totalorder %s42, 1
      %p226 = por %p224, %p225
      %p228 = scmp.ne.s32.totalorder %s213, %s227
      %p229 = scmp.eq.s32.totalorder %s42, 0
      %p230 = por %p228, %p229
      %s232 = sadd.s32 %s231, 1
      %p235 = scmp.eq.s32.totalorder %s36, 1
      %p236 = scmp.ne.s32.totalorder %s231, %s233
      %p237 = scmp.eq.s32.totalorder %s36, 0
      %p238 = por %p236, %p237
      %p239 = scmp.ne.s32.totalorder %s231, %s233
      %p240 = scmp.eq.s32.totalorder %s41, 1
      %p241 = por %p239, %p240
      %p242 = scmp.ne.s32.totalorder %s233, %s234
      %p243 = scmp.eq.s32.totalorder %s41, 0
      %p244 = por %p242, %p243
      %p245 = scmp.ne.s32.totalorder %s233, %s234
      %p246 = scmp.eq.s32.totalorder %s42, 1
      %p247 = por %p245, %p246
      %p249 = scmp.ne.s32.totalorder %s234, %s248
      %p250 = scmp.eq.s32.totalorder %s42, 0
      %p251 = por %p249, %p250
      %s253 = sadd.s32 %s252, 1
      %p256 = scmp.eq.s32.totalorder %s36, 1
      %p257 = scmp.ne.s32.totalorder %s252, %s254
      %p258 = scmp.eq.s32.totalorder %s36, 0
      %p259 = por %p257, %p258
      %p260 = scmp.ne.s32.totalorder %s252, %s254
      %p261 = scmp.eq.s32.totalorder %s41, 1
      %p262 = por %p260, %p261
      %p263 = scmp.ne.s32.totalorder %s254, %s255
      %p264 = scmp.eq.s32.totalorder %s41, 0
      %p265 = por %p263, %p264
      %p266 = scmp.ne.s32.totalorder %s254, %s255
      %p267 = scmp.eq.s32.totalorder %s42, 1
      %p268 = por %p266, %p267
      %p270 = scmp.ne.s32.totalorder %s255, %s269
      %p271 = scmp.eq.s32.totalorder %s42, 0
      %p272 = por %p270, %p271
      %s274 = sadd.s32 %s273, 1
      %p277 = scmp.eq.s32.totalorder %s36, 1
      %p278 = scmp.ne.s32.totalorder %s273, %s275
      %p279 = scmp.eq.s32.totalorder %s36, 0
      %p280 = por %p278, %p279
      %p281 = scmp.ne.s32.totalorder %s273, %s275
      %p282 = scmp.eq.s32.totalorder %s41, 1
      %p283 = por %p281, %p282
      %p284 = scmp.ne.s32.totalorder %s275, %s276
      %p285 = scmp.eq.s32.totalorder %s41, 0
      %p286 = por %p284, %p285
      %p287 = scmp.ne.s32.totalorder %s275, %s276
      %p288 = scmp.eq.s32.totalorder %s42, 1
      %p289 = por %p287, %p288
      %p291 = scmp.ne.s32.totalorder %s276, %s290
      %p292 = scmp.eq.s32.totalorder %s42, 0
      %p293 = por %p291, %p292
      %s295 = sadd.s32 %s294, 1
      %p298 = scmp.eq.s32.totalorder %s36, 1
      %p299 = scmp.ne.s32.totalorder %s294, %s296
      %p300 = scmp.eq.s32.totalorder %s36, 0
      %p301 = por %p299, %p300
      %p302 = scmp.ne.s32.totalorder %s294, %s296
      %p303 = scmp.eq.s32.totalorder %s41, 1
      %p304 = por %p302, %p303
      %p305 = scmp.ne.s32.totalorder %s296, %s297
      %p306 = scmp.eq.s32.totalorder %s41, 0
      %p307 = por %p305, %p306
      %p308 = scmp.ne.s32.totalorder %s296, %s297
      %p309 = scmp.eq.s32.totalorder %s42, 1
      %p310 = por %p308, %p309
      %p312 = scmp.ne.s32.totalorder %s297, %s311
      %p313 = scmp.eq.s32.totalorder %s42, 0
      %p314 = por %p312, %p313
      %s316 = sadd.s32 %s315, 1
      %p319 = scmp.eq.s32.totalorder %s36, 1
      %p320 = scmp.ne.s32.totalorder %s315, %s317
      %p321 = scmp.eq.s32.totalorder %s36, 0
      %p322 = por %p320, %p321
      %p323 = scmp.ne.s32.totalorder %s315, %s317
      %p324 = scmp.eq.s32.totalorder %s41, 1
      %p325 = por %p323, %p324
      %p326 = scmp.ne.s32.totalorder %s317, %s318
      %p327 = scmp.eq.s32.totalorder %s41, 0
      %p328 = por %p326, %p327
      %p329 = scmp.ne.s32.totalorder %s317, %s318
      %p330 = scmp.eq.s32.totalorder %s42, 1
      %p331 = por %p329, %p330
      %p333 = scmp.ne.s32.totalorder %s318, %s332
      %p334 = scmp.eq.s32.totalorder %s42, 0
      %p335 = por %p333, %p334
      %s337 = sadd.s32 %s336, 1
      %p340 = scmp.eq.s32.totalorder %s36, 1
      %p341 = scmp.ne.s32.totalorder %s336, %s338
      %p342 = scmp.eq.s32.totalorder %s36, 0
      %p343 = por %p341, %p342
      %p344 = scmp.ne.s32.totalorder %s336, %s338
      %p345 = scmp.eq.s32.totalorder %s41, 1
      %p346 = por %p344, %p345
      %p347 = scmp.ne.s32.totalorder %s338, %s339
      %p348 = scmp.eq.s32.totalorder %s41, 0
      %p349 = por %p347, %p348
      %p350 = scmp.ne.s32.totalorder %s338, %s339
      %p351 = scmp.eq.s32.totalorder %s42, 1
      %p352 = por %p350, %p351
      %p354 = scmp.ne.s32.totalorder %s339, %s353
      %p355 = scmp.eq.s32.totalorder %s42, 0
      %p356 = por %p354, %p355
      %s358 = sadd.s32 %s357, 1
      %p361 = scmp.eq.s32.totalorder %s36, 1
      %p362 = scmp.ne.s32.totalorder %s357, %s359
      %p363 = scmp.eq.s32.totalorder %s36, 0
      %p364 = por %p362, %p363
      %p365 = scmp.ne.s32.totalorder %s357, %s359
      %p366 = scmp.eq.s32.totalorder %s41, 1
      %p367 = por %p365, %p366
      %p368 = scmp.ne.s32.totalorder %s359, %s360
      %p369 = scmp.eq.s32.totalorder %s41, 0
      %p370 = por %p368, %p369
      %p371 = scmp.ne.s32.totalorder %s359, %s360
      %p372 = scmp.eq.s32.totalorder %s42, 1
      %p373 = por %p371, %p372
      %p375 = scmp.ne.s32.totalorder %s360, %s374
      %p376 = scmp.eq.s32.totalorder %s42, 0
      %p377 = por %p375, %p376
      %s379 = sadd.s32 %s378, 1
      %p382 = scmp.eq.s32.totalorder %s36, 1
      %p383 = scmp.ne.s32.totalorder %s378, %s380
      %p384 = scmp.eq.s32.totalorder %s36, 0
      %p385 = por %p383, %p384
      %p386 = scmp.ne.s32.totalorder %s378, %s380
      %p387 = scmp.eq.s32.totalorder %s41, 1
      %p388 = por %p386, %p387
      %p389 = scmp.ne.s32.totalorder %s380, %s381
      %p390 = scmp.eq.s32.totalorder %s41, 0
      %p391 = por %p389, %p390
      %p392 = scmp.ne.s32.totalorder %s380, %s381
      %p393 = scmp.eq.s32.totalorder %s42, 1
      %p394 = por %p392, %p393
      %p396 = scmp.ne.s32.totalorder %s381, %s395
      %p397 = scmp.eq.s32.totalorder %s42, 0
      %p398 = por %p396, %p397
      %s400 = sadd.s32 %s399, 1
      %p403 = scmp.eq.s32.totalorder %s36, 1
      %p404 = scmp.ne.s32.totalorder %s399, %s401
      %p405 = scmp.eq.s32.totalorder %s36, 0
      %p406 = por %p404, %p405
      %p407 = scmp.ne.s32.totalorder %s399, %s401
      %p408 = scmp.eq.s32.totalorder %s41, 1
      %p409 = por %p407, %p408
      %p410 = scmp.ne.s32.totalorder %s401, %s402
      %p411 = scmp.eq.s32.totalorder %s41, 0
      %p412 = por %p410, %p411
      %p413 = scmp.ne.s32.totalorder %s401, %s402
      %p414 = scmp.eq.s32.totalorder %s42, 1
      %p415 = por %p413, %p414
      %p417 = scmp.ne.s32.totalorder %s402, %s416
      %p418 = scmp.eq.s32.totalorder %s42, 0
      %p419 = por %p417, %p418
      %s421 = sadd.s32 %s420, 1
      %p424 = scmp.eq.s32.totalorder %s36, 1
      %p425 = scmp.ne.s32.totalorder %s420, %s422
      %p426 = scmp.eq.s32.totalorder %s36, 0
      %p427 = por %p425, %p426
      %p428 = scmp.ne.s32.totalorder %s420, %s422
      %p429 = scmp.eq.s32.totalorder %s41, 1
      %p430 = por %p428, %p429
      %p431 = scmp.ne.s32.totalorder %s422, %s423
      %p432 = scmp.eq.s32.totalorder %s41, 0
      %p433 = por %p431, %p432
      %p434 = scmp.ne.s32.totalorder %s422, %s423
      %p435 = scmp.eq.s32.totalorder %s42, 1
      %p436 = por %p434, %p435
      %p438 = scmp.ne.s32.totalorder %s423, %s437
      %p439 = scmp.eq.s32.totalorder %s42, 0
      %p440 = por %p438, %p439
      %s442 = sadd.s32 %s441, 1
      %p445 = scmp.eq.s32.totalorder %s36, 1
      %p446 = scmp.ne.s32.totalorder %s441, %s443
      %p447 = scmp.eq.s32.totalorder %s36, 0
      %p448 = por %p446, %p447
      %p449 = scmp.ne.s32.totalorder %s441, %s443
      %p450 = scmp.eq.s32.totalorder %s41, 1
      %p451 = por %p449, %p450
      %p452 = scmp.ne.s32.totalorder %s443, %s444
      %p453 = scmp.eq.s32.totalorder %s41, 0
      %p454 = por %p452, %p453
      %p455 = scmp.ne.s32.totalorder %s443, %s444
      %p456 = scmp.eq.s32.totalorder %s42, 1
      %p457 = por %p455, %p456
      %p459 = scmp.ne.s32.totalorder %s444, %s458
      %p460 = scmp.eq.s32.totalorder %s42, 0
      %p461 = por %p459, %p460
      %s462 = ssub.s32 %s43, %s55
      %p463 = scmp.eq.s32.totalorder %s462, 0
      %s465 = sadd.s32 %s464, 1
      %s466 = scalar_select %p463, %s464, %s465
      %p469 = pneg %p463
      %p470 = scmp.eq.s32.totalorder %s36, 1
      %p471 = por %p469, %p470
      %p472 = scmp.ne.s32.totalorder %s464, %s467
      %p473 = scmp.eq.s32.totalorder %s36, 0
      %p474 = por %p472, %p473
      %p475 = scmp.ne.s32.totalorder %s464, %s467
      %p476 = scmp.eq.s32.totalorder %s41, 1
      %p477 = por %p475, %p476
      %p478 = scmp.ne.s32.totalorder %s467, %s468
      %p479 = scmp.eq.s32.totalorder %s41, 0
      %p480 = por %p478, %p479
      %p481 = scmp.ne.s32.totalorder %s467, %s468
      %p482 = scmp.eq.s32.totalorder %s42, 1
      %p483 = por %p481, %p482
      %p485 = scmp.ne.s32.totalorder %s468, %s484
      %p486 = scmp.eq.s32.totalorder %s42, 0
      %p487 = por %p485, %p486
      %s488 = ssub.s32 %s43, %s55
      %p489 = scmp.eq.s32.totalorder %s488, 0
      %s491 = sadd.s32 %s490, 1
      %s492 = scalar_select %p489, %s490, %s491
      %p495 = pneg %p489
      %p496 = scmp.eq.s32.totalorder %s36, 1
      %p497 = por %p495, %p496
      %p498 = scmp.ne.s32.totalorder %s490, %s493
      %p499 = scmp.eq.s32.totalorder %s36, 0
      %p500 = por %p498, %p499
      %p501 = scmp.ne.s32.totalorder %s490, %s493
      %p502 = scmp.eq.s32.totalorder %s41, 1
      %p503 = por %p501, %p502
      %p504 = scmp.ne.s32.totalorder %s493, %s494
      %p505 = scmp.eq.s32.totalorder %s41, 0
      %p506 = por %p504, %p505
      %p507 = scmp.ne.s32.totalorder %s493, %s494
      %p508 = scmp.eq.s32.totalorder %s42, 1
      %p509 = por %p507, %p508
      %p511 = scmp.ne.s32.totalorder %s494, %s510
      %p512 = scmp.eq.s32.totalorder %s42, 0
      %p513 = por %p511, %p512
      %s514 = ssub.s32 %s43, %s55
      %p515 = scmp.eq.s32.totalorder %s514, 0
      %s517 = sadd.s32 %s516, 1
      %s518 = scalar_select %p515, %s516, %s517
      %p521 = pneg %p515
      %p522 = scmp.eq.s32.totalorder %s36, 1
      %p523 = por %p521, %p522
      %p524 = scmp.ne.s32.totalorder %s516, %s519
      %p525 = scmp.eq.s32.totalorder %s36, 0
      %p526 = por %p524, %p525
      %p527 = scmp.ne.s32.totalorder %s516, %s519
      %p528 = scmp.eq.s32.totalorder %s41, 1
      %p529 = por %p527, %p528
      %p530 = scmp.ne.s32.totalorder %s519, %s520
      %p531 = scmp.eq.s32.totalorder %s41, 0
      %p532 = por %p530, %p531
      %p533 = scmp.ne.s32.totalorder %s519, %s520
      %p534 = scmp.eq.s32.totalorder %s42, 1
      %p535 = por %p533, %p534
      %p537 = scmp.ne.s32.totalorder %s520, %s536
      %p538 = scmp.eq.s32.totalorder %s42, 0
      %p539 = por %p537, %p538
      %s540 = ssub.s32 %s43, %s55
      %p541 = scmp.eq.s32.totalorder %s540, 0
      %s543 = sadd.s32 %s542, 1
      %s544 = scalar_select %p541, %s542, %s543
      %p547 = pneg %p541
      %p548 = scmp.eq.s32.totalorder %s36, 1
      %p549 = por %p547, %p548
      %p550 = scmp.ne.s32.totalorder %s542, %s545
      %p551 = scmp.eq.s32.totalorder %s36, 0
      %p552 = por %p550, %p551
      %p553 = scmp.ne.s32.totalorder %s542, %s545
      %p554 = scmp.eq.s32.totalorder %s41, 1
      %p555 = por %p553, %p554
      %p556 = scmp.ne.s32.totalorder %s545, %s546
      %p557 = scmp.eq.s32.totalorder %s41, 0
      %p558 = por %p556, %p557
      %p559 = scmp.ne.s32.totalorder %s545, %s546
      %p560 = scmp.eq.s32.totalorder %s42, 1
      %p561 = por %p559, %p560
      %p563 = scmp.ne.s32.totalorder %s546, %s562
      %p564 = scmp.eq.s32.totalorder %s42, 0
      %p565 = por %p563, %p564
      %p566 = scmp.le.s32.totalorder 1, %s36
      %p567 = scmp.lt.s32.totalorder %s36, 3
      %p568 = pnand %p566, %p567
      %p569 = pneg %p568
      // Predicated region
      $region9: #{reward_net_forward.1} parent=5 // pred_check
        _
      $region10: #{reward_net_forward.1} parent=5 // pred_check_branch
        %571 = sbr.rel (%p568) target = $region12
      $region11: #{reward_net_forward.1} parent=5 // pred_region
        %s572 = ssub.s32 %s36, 1
        // Predicated region
        $region13: #{reward_net_forward.1} parent=11 // pred_check
          %p573 = pneg %p181
        $region14: #{reward_net_forward.1} parent=11 // pred_check_branch
          %575 = sbr.rel (%p573) target = $region16
        $region15: #{reward_net_forward.1} parent=11 // pred_region
          _
        $region16: #{reward_net_forward.1} parent=11 // pred_fallthru
          _
        // Predicated region
        $region17: #{reward_net_forward.1} parent=11 // pred_check
          %p576 = pneg %p202
        $region18: #{reward_net_forward.1} parent=11 // pred_check_branch
          %578 = sbr.rel (%p576) target = $region20
        $region19: #{reward_net_forward.1} parent=11 // pred_region
          %580 = vsyncadd [#allocation4], 0
          %s582 = sshll.u32 %s5, 4
          %s583 = int_to_ptr.hbm [resolvable:$true] %s582
          %s584 = sshll.u32 [#allocation3], 4
          %s585 = int_to_ptr.vmem [resolvable:$true] %s584
          %587 = dma.hbm_to_vmem [thread:$0]  %s583, 16, %s585, [#allocation4]
        $region20: #{reward_net_forward.1} parent=11 // pred_fallthru
          _
        // Predicated region
        $region21: #{reward_net_forward.1} parent=11 // pred_check
          %p588 = pneg %p223
        $region22: #{reward_net_forward.1} parent=11 // pred_check_branch
          %590 = sbr.rel (%p588) target = $region24
        $region23: #{reward_net_forward.1} parent=11 // pred_region
          %592 = vsyncadd [#allocation6], 0
          %s593 = sshll.u32 %s6, 4
          %s594 = int_to_ptr.hbm [resolvable:$true] %s593
          %s595 = sshll.u32 [#allocation5], 4
          %s596 = int_to_ptr.vmem [resolvable:$true] %s595
          %601 = dma.hbm_to_vmem [thread:$0]  %s594, 2048, %s596, [#allocation6], 128, 128, 8
        $region24: #{reward_net_forward.1} parent=11 // pred_fallthru
          _
        // Predicated region
        $region25: #{reward_net_forward.1} parent=11 // pred_check
          %p602 = pneg %p244
        $region26: #{reward_net_forward.1} parent=11 // pred_check_branch
          %604 = sbr.rel (%p602) target = $region28
        $region27: #{reward_net_forward.1} parent=11 // pred_region
          %606 = vsyncadd [#allocation6], 0
          %s608 = sshll.u32 %s7, 4
          %s609 = int_to_ptr.hbm [resolvable:$true] %s608
          %s610 = sshll.u32 [#allocation7], 4
          %s611 = int_to_ptr.vmem [resolvable:$true] %s610
          %613 = dma.hbm_to_vmem [thread:$0]  %s609, 16, %s611, [#allocation6]
        $region28: #{reward_net_forward.1} parent=11 // pred_fallthru
          _
        // Predicated region
        $region29: #{reward_net_forward.1} parent=11 // pred_check
          %p614 = pneg %p265
        $region30: #{reward_net_forward.1} parent=11 // pred_check_branch
          %616 = sbr.rel (%p614) target = $region32
        $region31: #{reward_net_forward.1} parent=11 // pred_region
          _
        $region32: #{reward_net_forward.1} parent=11 // pred_fallthru
          _
        // Predicated region
        $region33: #{reward_net_forward.1} parent=11 // pred_check
          %p617 = pneg %p286
        $region34: #{reward_net_forward.1} parent=11 // pred_check_branch
          %619 = sbr.rel (%p617) target = $region36
        $region35: #{reward_net_forward.1} parent=11 // pred_region
          %621 = vsyncadd [#allocation9], 0
          %s623 = sshll.u32 %s9, 4
          %s624 = int_to_ptr.hbm [resolvable:$true] %s623
          %s625 = sshll.u32 [#allocation8], 4
          %s626 = int_to_ptr.vmem [resolvable:$true] %s625
          %628 = dma.hbm_to_vmem [thread:$0]  %s624, 16, %s626, [#allocation9]
        $region36: #{reward_net_forward.1} parent=11 // pred_fallthru
          _
        // Predicated region
        $region37: #{reward_net_forward.1} parent=11 // pred_check
          %p629 = pneg %p307
        $region38: #{reward_net_forward.1} parent=11 // pred_check_branch
          %631 = sbr.rel (%p629) target = $region40
        $region39: #{reward_net_forward.1} parent=11 // pred_region
          %633 = vsyncadd [#allocation9], 0
          %s634 = sshll.u32 %s10, 4
          %s635 = int_to_ptr.hbm [resolvable:$true] %s634
          %s636 = sshll.u32 [#allocation10], 4
          %s637 = int_to_ptr.vmem [resolvable:$true] %s636
          %642 = dma.hbm_to_vmem [thread:$0]  %s635, 2048, %s637, [#allocation9], 128, 128, 8
        $region40: #{reward_net_forward.1} parent=11 // pred_fallthru
          _
        // Predicated region
        $region41: #{reward_net_forward.1} parent=11 // pred_check
          %p643 = pneg %p328
        $region42: #{reward_net_forward.1} parent=11 // pred_check_branch
          %645 = sbr.rel (%p643) target = $region44
        $region43: #{reward_net_forward.1} parent=11 // pred_region
          %647 = vsyncadd [#allocation12], 0
          %s649 = sshll.u32 %s11, 4
          %s650 = int_to_ptr.hbm [resolvable:$true] %s649
          %s651 = sshll.u32 [#allocation11], 4
          %s652 = int_to_ptr.vmem [resolvable:$true] %s651
          %654 = dma.hbm_to_vmem [thread:$0]  %s650, 16, %s652, [#allocation12]
        $region44: #{reward_net_forward.1} parent=11 // pred_fallthru
          _
        // Predicated region
        $region45: #{reward_net_forward.1} parent=11 // pred_check
          %p655 = pneg %p349
        $region46: #{reward_net_forward.1} parent=11 // pred_check_branch
          %657 = sbr.rel (%p655) target = $region48
        $region47: #{reward_net_forward.1} parent=11 // pred_region
          %659 = vsyncadd [#allocation12], 0
          %s660 = sshll.u32 %s12, 4
          %s661 = int_to_ptr.hbm [resolvable:$true] %s660
          %s662 = sshll.u32 [#allocation13], 4
          %s663 = int_to_ptr.vmem [resolvable:$true] %s662
          %668 = dma.hbm_to_vmem [thread:$0]  %s661, 4096, %s663, [#allocation12], 128, 128, 8
        $region48: #{reward_net_forward.1} parent=11 // pred_fallthru
          _
        // Predicated region
        $region49: #{reward_net_forward.1} parent=11 // pred_check
          %p669 = pneg %p370
        $region50: #{reward_net_forward.1} parent=11 // pred_check_branch
          %671 = sbr.rel (%p669) target = $region52
        $region51: #{reward_net_forward.1} parent=11 // pred_region
          %673 = vsyncadd [#allocation15], 0
          %s675 = sshll.u32 %s13, 4
          %s676 = int_to_ptr.hbm [resolvable:$true] %s675
          %s677 = sshll.u32 [#allocation14], 4
          %s678 = int_to_ptr.vmem [resolvable:$true] %s677
          %680 = dma.hbm_to_vmem [thread:$0]  %s676, 16, %s678, [#allocation15]
        $region52: #{reward_net_forward.1} parent=11 // pred_fallthru
          _
        // Predicated region
        $region53: #{reward_net_forward.1} parent=11 // pred_check
          %p681 = pneg %p391
        $region54: #{reward_net_forward.1} parent=11 // pred_check_branch
          %683 = sbr.rel (%p681) target = $region56
        $region55: #{reward_net_forward.1} parent=11 // pred_region
          _
        $region56: #{reward_net_forward.1} parent=11 // pred_fallthru
          _
        // Predicated region
        $region57: #{reward_net_forward.1} parent=11 // pred_check
          %p684 = pneg %p412
        $region58: #{reward_net_forward.1} parent=11 // pred_check_branch
          %686 = sbr.rel (%p684) target = $region60
        $region59: #{reward_net_forward.1} parent=11 // pred_region
          %688 = vsyncadd [#allocation15], 0
          %s690 = sshll.u32 %s15, 4
          %s691 = int_to_ptr.hbm [resolvable:$true] %s690
          %s692 = sshll.u32 [#allocation16], 4
          %s693 = int_to_ptr.vmem [resolvable:$true] %s692
          %695 = dma.hbm_to_vmem [thread:$0]  %s691, 16, %s693, [#allocation15]
        $region60: #{reward_net_forward.1} parent=11 // pred_fallthru
          _
        // Predicated region
        $region61: #{reward_net_forward.1} parent=11 // pred_check
          %p696 = pneg %p433
        $region62: #{reward_net_forward.1} parent=11 // pred_check_branch
          %698 = sbr.rel (%p696) target = $region64
        $region63: #{reward_net_forward.1} parent=11 // pred_region
          %700 = vsyncadd [#allocation18], 0
          %s702 = sshll.u32 %s16, 4
          %s703 = int_to_ptr.hbm [resolvable:$true] %s702
          %s704 = sshll.u32 [#allocation17], 4
          %s705 = int_to_ptr.vmem [resolvable:$true] %s704
          %707 = dma.hbm_to_vmem [thread:$0]  %s703, 16, %s705, [#allocation18]
        $region64: #{reward_net_forward.1} parent=11 // pred_fallthru
          _
        // Predicated region
        $region65: #{reward_net_forward.1} parent=11 // pred_check
          %p708 = pneg %p454
        $region66: #{reward_net_forward.1} parent=11 // pred_check_branch
          %710 = sbr.rel (%p708) target = $region68
        $region67: #{reward_net_forward.1} parent=11 // pred_region
          _
        $region68: #{reward_net_forward.1} parent=11 // pred_fallthru
          _
      $region12: #{reward_net_forward.1} parent=5 // pred_fallthru
        _
      %p711 = scmp.lt.s32.totalorder %s36, 2
      // Predicated region
      $region69: #{reward_net_forward.1} parent=5 // pred_check
        %p712 = pneg %p711
      $region70: #{reward_net_forward.1} parent=5 // pred_check_branch
        %714 = sbr.rel (%p712) target = $region72
      $region71: #{reward_net_forward.1} parent=5 // pred_region
        // Predicated region
        $region73: #{reward_net_forward.1} parent=71 // pred_check
          %p715 = pneg %p70
        $region74: #{reward_net_forward.1} parent=71 // pred_check_branch
          %717 = sbr.rel (%p715) target = $region76
        $region75: #{reward_net_forward.1} parent=71 // pred_region
          %p718 = scmp.lt.s32.totalorder %s43, 1
          %s719 = scalar_select %p718, %s43, 1
          %p720 = scmp.lt.s32.totalorder %s44, 0
          %s721 = scalar_select %p720, %s44, 0
          %s722 = sadd.s32 %s721, %s719
          %s723 = smul.addr %s722, 8
          %s724 = scalar_lea.vmem %s0, %s723
        $region76: #{reward_net_forward.1} parent=71 // pred_fallthru
          _
        // Predicated region
        $region77: #{reward_net_forward.1} parent=71 // pred_check
          %p725 = pneg %p98
        $region78: #{reward_net_forward.1} parent=71 // pred_check_branch
          %727 = sbr.rel (%p725) target = $region80
        $region79: #{reward_net_forward.1} parent=71 // pred_region
          %p728 = scmp.lt.s32.totalorder %s43, 1
          %s729 = scalar_select %p728, %s43, 1
          %p730 = scmp.lt.s32.totalorder %s44, 0
          %s731 = scalar_select %p730, %s44, 0
          %s732 = smul.addr %s731, 2
          %s733 = smul.addr %s729, 2
          %s734 = sadd.s32 %s732, %s733
          %s735 = smul.addr %s734, 8
          %s736 = scalar_lea.vmem %s1, %s735
        $region80: #{reward_net_forward.1} parent=71 // pred_fallthru
          _
        // Predicated region
        $region81: #{reward_net_forward.1} parent=71 // pred_check
          %p737 = pneg %p126
        $region82: #{reward_net_forward.1} parent=71 // pred_check_branch
          %739 = sbr.rel (%p737) target = $region84
        $region83: #{reward_net_forward.1} parent=71 // pred_region
          %p740 = scmp.lt.s32.totalorder %s43, 1
          %s741 = scalar_select %p740, %s43, 1
          %p742 = scmp.lt.s32.totalorder %s44, 0
          %s743 = scalar_select %p742, %s44, 0
          %s744 = sadd.s32 %s743, %s741
          %s745 = smul.addr %s744, 8
          %s746 = scalar_lea.vmem %s2, %s745
        $region84: #{reward_net_forward.1} parent=71 // pred_fallthru
          _
        // Predicated region
        $region85: #{reward_net_forward.1} parent=71 // pred_check
          %p747 = pneg %p154
        $region86: #{reward_net_forward.1} parent=71 // pred_check_branch
          %749 = sbr.rel (%p747) target = $region88
        $region87: #{reward_net_forward.1} parent=71 // pred_region
          %p750 = scmp.lt.s32.totalorder %s43, 1
          %s751 = scalar_select %p750, %s43, 1
          %p752 = scmp.lt.s32.totalorder %s44, 0
          %s753 = scalar_select %p752, %s44, 0
          %s754 = smul.addr %s753, 2
          %s755 = smul.addr %s751, 2
          %s756 = sadd.s32 %s754, %s755
          %s757 = smul.addr %s756, 8
          %s758 = scalar_lea.vmem %s3, %s757
        $region88: #{reward_net_forward.1} parent=71 // pred_fallthru
          _
      $region72: #{reward_net_forward.1} parent=5 // pred_fallthru
        _
      %p759 = scmp.le.s32.totalorder 1, %s36
      %p760 = scmp.lt.s32.totalorder %s36, 3
      %p761 = pnand %p759, %p760
      %p762 = pneg %p761
      // Predicated region
      $region89: #{reward_net_forward.1} parent=5 // pred_check
        _
      $region90: #{reward_net_forward.1} parent=5 // pred_check_branch
        %764 = sbr.rel (%p761) target = $region92
      $region91: #{reward_net_forward.1} parent=5 // pred_region
        %s765 = ssub.s32 %s36, 1
        // Predicated region
        $region93: #{reward_net_forward.1} parent=91 // pred_check
          %p766 = pneg %p202
        $region94: #{reward_net_forward.1} parent=91 // pred_check_branch
          %768 = sbr.rel (%p766) target = $region96
        $region95: #{reward_net_forward.1} parent=91 // pred_region
          %770 = dma.done [#allocation4], 16
        $region96: #{reward_net_forward.1} parent=91 // pred_fallthru
          _
        // Predicated region
        $region97: #{reward_net_forward.1} parent=91 // pred_check
          %p771 = pneg %p223
        $region98: #{reward_net_forward.1} parent=91 // pred_check_branch
          %773 = sbr.rel (%p771) target = $region100
        $region99: #{reward_net_forward.1} parent=91 // pred_region
          %775 = dma.done [#allocation6], 2048
        $region100: #{reward_net_forward.1} parent=91 // pred_fallthru
          _
        // Predicated region
        $region101: #{reward_net_forward.1} parent=91 // pred_check
          %p776 = pneg %p244
        $region102: #{reward_net_forward.1} parent=91 // pred_check_branch
          %778 = sbr.rel (%p776) target = $region104
        $region103: #{reward_net_forward.1} parent=91 // pred_region
          %780 = dma.done [#allocation6], 16
        $region104: #{reward_net_forward.1} parent=91 // pred_fallthru
          _
        // Predicated region
        $region105: #{reward_net_forward.1} parent=91 // pred_check
          %p781 = pneg %p286
        $region106: #{reward_net_forward.1} parent=91 // pred_check_branch
          %783 = sbr.rel (%p781) target = $region108
        $region107: #{reward_net_forward.1} parent=91 // pred_region
          %785 = dma.done [#allocation9], 16
        $region108: #{reward_net_forward.1} parent=91 // pred_fallthru
          _
        // Predicated region
        $region109: #{reward_net_forward.1} parent=91 // pred_check
          %p786 = pneg %p307
        $region110: #{reward_net_forward.1} parent=91 // pred_check_branch
          %788 = sbr.rel (%p786) target = $region112
        $region111: #{reward_net_forward.1} parent=91 // pred_region
          %790 = dma.done [#allocation9], 2048
        $region112: #{reward_net_forward.1} parent=91 // pred_fallthru
          _
        // Predicated region
        $region113: #{reward_net_forward.1} parent=91 // pred_check
          %p791 = pneg %p328
        $region114: #{reward_net_forward.1} parent=91 // pred_check_branch
          %793 = sbr.rel (%p791) target = $region116
        $region115: #{reward_net_forward.1} parent=91 // pred_region
          %795 = dma.done [#allocation12], 16
        $region116: #{reward_net_forward.1} parent=91 // pred_fallthru
          _
        // Predicated region
        $region117: #{reward_net_forward.1} parent=91 // pred_check
          %p796 = pneg %p349
        $region118: #{reward_net_forward.1} parent=91 // pred_check_branch
          %798 = sbr.rel (%p796) target = $region120
        $region119: #{reward_net_forward.1} parent=91 // pred_region
          %800 = dma.done [#allocation12], 4096
        $region120: #{reward_net_forward.1} parent=91 // pred_fallthru
          _
        // Predicated region
        $region121: #{reward_net_forward.1} parent=91 // pred_check
          %p801 = pneg %p370
        $region122: #{reward_net_forward.1} parent=91 // pred_check_branch
          %803 = sbr.rel (%p801) target = $region124
        $region123: #{reward_net_forward.1} parent=91 // pred_region
          %805 = dma.done [#allocation15], 16
        $region124: #{reward_net_forward.1} parent=91 // pred_fallthru
          _
        // Predicated region
        $region125: #{reward_net_forward.1} parent=91 // pred_check
          %p806 = pneg %p412
        $region126: #{reward_net_forward.1} parent=91 // pred_check_branch
          %808 = sbr.rel (%p806) target = $region128
        $region127: #{reward_net_forward.1} parent=91 // pred_region
          %810 = dma.done [#allocation15], 16
        $region128: #{reward_net_forward.1} parent=91 // pred_fallthru
          _
        // Predicated region
        $region129: #{reward_net_forward.1} parent=91 // pred_check
          %p811 = pneg %p433
        $region130: #{reward_net_forward.1} parent=91 // pred_check_branch
          %813 = sbr.rel (%p811) target = $region132
        $region131: #{reward_net_forward.1} parent=91 // pred_region
          %815 = dma.done [#allocation18], 16
        $region132: #{reward_net_forward.1} parent=91 // pred_fallthru
          _
        %p816 = scmp.lt.s32.totalorder %s45, 1
        %s817 = scalar_select %p816, %s45, 1
        %p818 = scmp.lt.s32.totalorder %s46, 0
        %s819 = scalar_select %p818, %s46, 0
        %s820 = sadd.s32 %s819, %s817
        %s821 = smul.addr %s820, 8
        %s822 = scalar_lea.vmem %s0, %s821
        %p823 = pneg %p76
        %p824 = pneg %p73
        %p825 = scmp.lt.s32.totalorder %s45, 1
        %s826 = scalar_select %p825, %s45, 1
        %p827 = scmp.lt.s32.totalorder %s46, 0
        %s828 = scalar_select %p827, %s46, 0
        %s829 = smul.addr %s828, 2
        %s830 = smul.addr %s826, 2
        %s831 = sadd.s32 %s829, %s830
        %s832 = smul.addr %s831, 8
        %s833 = scalar_lea.vmem %s1, %s832
        %p834 = pneg %p104
        %p835 = pneg %p101
        %p836 = scmp.lt.s32.totalorder %s45, 1
        %s837 = scalar_select %p836, %s45, 1
        %p838 = scmp.lt.s32.totalorder %s46, 0
        %s839 = scalar_select %p838, %s46, 0
        %s840 = sadd.s32 %s839, %s837
        %s841 = smul.addr %s840, 8
        %s842 = scalar_lea.vmem %s2, %s841
        %p843 = pneg %p132
        %p844 = pneg %p129
        %p845 = scmp.lt.s32.totalorder %s45, 1
        %s846 = scalar_select %p845, %s45, 1
        %p847 = scmp.lt.s32.totalorder %s46, 0
        %s848 = scalar_select %p847, %s46, 0
        %s849 = smul.addr %s848, 2
        %s850 = smul.addr %s846, 2
        %s851 = sadd.s32 %s849, %s850
        %s852 = smul.addr %s851, 8
        %s853 = scalar_lea.vmem %s3, %s852
        %p854 = pneg %p160
        %p855 = pneg %p157
        %p856 = pneg %p181
        %p857 = pneg %p178
        %p858 = pneg %p202
        %p859 = pneg %p199
        %p860 = pneg %p223
        %p861 = pneg %p220
        %p862 = pneg %p244
        %p863 = pneg %p241
        %p864 = pneg %p265
        %p865 = pneg %p262
        %p866 = pneg %p286
        %p867 = pneg %p283
        %p868 = pneg %p307
        %p869 = pneg %p304
        %p870 = pneg %p328
        %p871 = pneg %p325
        %p872 = pneg %p349
        %p873 = pneg %p346
        %p874 = pneg %p370
        %p875 = pneg %p367
        %p876 = pneg %p391
        %p877 = pneg %p388
        %p878 = pneg %p412
        %p879 = pneg %p409
        %p880 = pneg %p433
        %p881 = pneg %p430
        %p882 = pneg %p454
        %p883 = pneg %p451
        %p884 = pneg %p480
        %p885 = pneg %p477
        %p886 = scmp.lt.s32.totalorder %s45, 1
        %s887 = scalar_select %p886, %s45, 1
        %s888 = scalar_lea.vmem %s18, %s887
        %p889 = pneg %p506
        %p890 = pneg %p503
        %p891 = scmp.lt.s32.totalorder %s45, 1
        %s892 = scalar_select %p891, %s45, 1
        %s893 = scalar_lea.vmem %s19, %s892
        %p894 = pneg %p532
        %p895 = pneg %p529
        %p896 = scmp.lt.s32.totalorder %s45, 1
        %s897 = scalar_select %p896, %s45, 1
        %s898 = scalar_lea.vmem %s20, %s897
        %p899 = pneg %p558
        %p900 = pneg %p555
        %p901 = scmp.lt.s32.totalorder %s45, 1
        %s902 = scalar_select %p901, %s45, 1
        %s903 = scalar_lea.vmem %s21, %s902
        %p904 = scmp.lt.s32.totalorder %s45, 1
        %s905 = scalar_select %p904, %s45, 1
        %p906 = scmp.lt.s32.totalorder %s46, 0
        %s907 = scalar_select %p906, %s46, 0
        %s908 = sadd.s32 %s907, %s905
        %s909 = smul.addr %s908, 8
        %s910 = scalar_lea.vmem %s0, %s909
        %p911 = scmp.lt.s32.totalorder %s45, 1
        %s912 = scalar_select %p911, %s45, 1
        %p913 = scmp.lt.s32.totalorder %s46, 0
        %s914 = scalar_select %p913, %s46, 0
        %s915 = smul.addr %s914, 2
        %s916 = smul.addr %s912, 2
        %s917 = sadd.s32 %s915, %s916
        %s918 = smul.addr %s917, 8
        %s919 = scalar_lea.vmem %s1, %s918
        %p920 = scmp.lt.s32.totalorder %s45, 1
        %s921 = scalar_select %p920, %s45, 1
        %p922 = scmp.lt.s32.totalorder %s46, 0
        %s923 = scalar_select %p922, %s46, 0
        %s924 = sadd.s32 %s923, %s921
        %s925 = smul.addr %s924, 8
        %s926 = scalar_lea.vmem %s2, %s925
        %p927 = scmp.lt.s32.totalorder %s45, 1
        %s928 = scalar_select %p927, %s45, 1
        %p929 = scmp.lt.s32.totalorder %s46, 0
        %s930 = scalar_select %p929, %s46, 0
        %s931 = smul.addr %s930, 2
        %s932 = smul.addr %s928, 2
        %s933 = sadd.s32 %s931, %s932
        %s934 = smul.addr %s933, 8
        %s935 = scalar_lea.vmem %s3, %s934
        %p936 = scmp.lt.s32.totalorder %s45, 1
        %s937 = scalar_select %p936, %s45, 1
        %s938 = scalar_lea.vmem %s18, %s937
        %p939 = scmp.lt.s32.totalorder %s45, 1
        %s940 = scalar_select %p939, %s45, 1
        %s941 = scalar_lea.vmem %s19, %s940
        %p942 = scmp.lt.s32.totalorder %s45, 1
        %s943 = scalar_select %p942, %s45, 1
        %s944 = scalar_lea.vmem %s20, %s943
        %p945 = scmp.lt.s32.totalorder %s45, 1
        %s946 = scalar_select %p945, %s45, 1
        %s947 = scalar_lea.vmem %s21, %s946
        %p948 = scmp.eq.s32.totalorder %s46, 0
        // Predicated region
        $region133: #{reward_net_forward.1} parent=91 // pred_check
          %p949 = pneg %p948
        $region134: #{reward_net_forward.1} parent=91 // pred_check_branch
          %951 = sbr.rel (%p949) target = $region136
        $region135: #{reward_net_forward.1} parent=91 // pred_region
          %vm952 = vcmask 0
          %953 = vst.msk [vmem:[%s938] sm:$0x1] %vm952, 0.0
          %954 = vst.msk [vmem:[%s941] sm:$0x1] %vm952, 0.0
          %955 = vst.msk [vmem:[%s944] sm:$0x1] %vm952, 0.0
          %956 = vst.msk [vmem:[%s947] sm:$0x1] %vm952, 0.0
        $region136: #{reward_net_forward.1} parent=91 // pred_fallthru
          _
        %v957 = vld [vmem:[%s910] sm:$0xff]
        %v958 = vld [vmem:[%s919] sm:$0xff]
        %v959 = vld [vmem:[%s919 + $0x8] sm:$0xff]
        %v960 = vld [vmem:[%s4] sm:$0xff]
        %v961 = vld [vmem:[%s4 + $0x8] sm:$0xff]
        %v962 = vld [vmem:[%s4 + $0x10] sm:$0xff]
        %v963 = vld [vmem:[%s4 + $0x18] sm:$0xff]
        %v964 = vld [vmem:[%s4 + $0x20] sm:$0xff]
        %v965 = vld [vmem:[%s4 + $0x28] sm:$0xff]
        %v966 = vld [vmem:[%s4 + $0x30] sm:$0xff]
        %v967 = vld [vmem:[%s4 + $0x38] sm:$0xff]
        %v968 = vld [vmem:[%s4 + $0x40] sm:$0xff]
        %v969 = vld [vmem:[%s4 + $0x48] sm:$0xff]
        %v970 = vld [vmem:[%s4 + $0x50] sm:$0xff]
        %v971 = vld [vmem:[%s4 + $0x58] sm:$0xff]
        %v972 = vld [vmem:[%s4 + $0x60] sm:$0xff]
        %v973 = vld [vmem:[%s4 + $0x68] sm:$0xff]
        %v974 = vld [vmem:[%s4 + $0x70] sm:$0xff]
        %v975 = vld [vmem:[%s4 + $0x78] sm:$0xff]
        %v976 = vld [vmem:[%s4 + $0x80] sm:$0xff]
        %v977 = vld [vmem:[%s4 + $0x88] sm:$0xff]
        %v978 = vld [vmem:[%s4 + $0x90] sm:$0xff]
        %v979 = vld [vmem:[%s4 + $0x98] sm:$0xff]
        %v980 = vld [vmem:[%s4 + $0xa0] sm:$0xff]
        %v981 = vld [vmem:[%s4 + $0xa8] sm:$0xff]
        %v982 = vld [vmem:[%s4 + $0xb0] sm:$0xff]
        %v983 = vld [vmem:[%s4 + $0xb8] sm:$0xff]
        %v984 = vld [vmem:[%s4 + $0xc0] sm:$0xff]
        %v985 = vld [vmem:[%s4 + $0xc8] sm:$0xff]
        %v986 = vld [vmem:[%s4 + $0xd0] sm:$0xff]
        %v987 = vld [vmem:[%s4 + $0xd8] sm:$0xff]
        %v988 = vld [vmem:[%s4 + $0xe0] sm:$0xff]
        %v989 = vld [vmem:[%s4 + $0xe8] sm:$0xff]
        %v990 = vld [vmem:[%s4 + $0xf0] sm:$0xff]
        %v991 = vld [vmem:[%s4 + $0xf8] sm:$0xff]
        %v992 = vld [vmem:[#allocation3] sm:$0x1]
        %v994 = vperm.slane %v992, 0
        %996 = vmatpush.msra.mxu0 %v975
        %997 = vmatpush.msra.mxu0 %v974
        %998 = vmatpush.msra.mxu0 %v973
        %999 = vmatpush.msra.mxu0 %v972
        %1000 = vmatpush.msra.mxu0 %v971
        %1001 = vmatpush.msra.mxu0 %v970
        %1002 = vmatpush.msra.mxu0 %v969
        %1003 = vmatpush.msra.mxu0 %v968
        %1004 = vmatpush.msra.mxu0 %v967
        %1005 = vmatpush.msra.mxu0 %v966
        %1006 = vmatpush.msra.mxu0 %v965
        %1007 = vmatpush.msra.mxu0 %v964
        %1008 = vmatpush.msra.mxu0 %v963
        %1009 = vmatpush.msra.mxu0 %v962
        %1010 = vmatpush.msra.mxu0 %v961
        %1011 = vmatpush.msra.mxu0 %v960
        %1012 = vmatmul.f32.gmra.mxu0 %v958
        %v1013 = vpop.f32.mrf.mxu0
        %v1014 = vadd.f32 %v994, %v1013
        %1015 = vdwg.mxu0
        %1016 = vmatpush.msra.mxu0 %v991
        %1017 = vmatpush.msra.mxu0 %v990
        %1018 = vmatpush.msra.mxu0 %v989
        %1019 = vmatpush.msra.mxu0 %v988
        %1020 = vmatpush.msra.mxu0 %v987
        %1021 = vmatpush.msra.mxu0 %v986
        %1022 = vmatpush.msra.mxu0 %v985
        %1023 = vmatpush.msra.mxu0 %v984
        %1024 = vmatpush.msra.mxu0 %v983
        %1025 = vmatpush.msra.mxu0 %v982
        %1026 = vmatpush.msra.mxu0 %v981
        %1027 = vmatpush.msra.mxu0 %v980
        %1028 = vmatpush.msra.mxu0 %v979
        %1029 = vmatpush.msra.mxu0 %v978
        %1030 = vmatpush.msra.mxu0 %v977
        %1031 = vmatpush.msra.mxu0 %v976
        %1032 = vmatmul.f32.gmra.mxu0 %v959
        %v1033 = vpop.f32.mrf.mxu0
        %v1034 = vadd.f32 %v1014, %v1033
        %1035 = vdwg.mxu0
        %v1036 = vmul.f32 %v1034, 0.01
        %v1037 = vmax.f32 %v1034, %v1036
        %v1038 = vld [vmem:[#allocation5] sm:$0xff]
        %v1039 = vld [vmem:[#allocation5 + $0x8] sm:$0xff]
        %v1040 = vld [vmem:[#allocation5 + $0x10] sm:$0xff]
        %v1041 = vld [vmem:[#allocation5 + $0x18] sm:$0xff]
        %v1042 = vld [vmem:[#allocation5 + $0x20] sm:$0xff]
        %v1043 = vld [vmem:[#allocation5 + $0x28] sm:$0xff]
        %v1044 = vld [vmem:[#allocation5 + $0x30] sm:$0xff]
        %v1045 = vld [vmem:[#allocation5 + $0x38] sm:$0xff]
        %v1046 = vld [vmem:[#allocation5 + $0x40] sm:$0xff]
        %v1047 = vld [vmem:[#allocation5 + $0x48] sm:$0xff]
        %v1048 = vld [vmem:[#allocation5 + $0x50] sm:$0xff]
        %v1049 = vld [vmem:[#allocation5 + $0x58] sm:$0xff]
        %v1050 = vld [vmem:[#allocation5 + $0x60] sm:$0xff]
        %v1051 = vld [vmem:[#allocation5 + $0x68] sm:$0xff]
        %v1052 = vld [vmem:[#allocation5 + $0x70] sm:$0xff]
        %v1053 = vld [vmem:[#allocation5 + $0x78] sm:$0xff]
        %v1054 = vld [vmem:[#allocation7] sm:$0x1]
        %v1056 = vperm.slane %v1054, 0
        %1058 = vmatpush.msra.mxu0 %v1053
        %1059 = vmatpush.msra.mxu0 %v1052
        %1060 = vmatpush.msra.mxu0 %v1051
        %1061 = vmatpush.msra.mxu0 %v1050
        %1062 = vmatpush.msra.mxu0 %v1049
        %1063 = vmatpush.msra.mxu0 %v1048
        %1064 = vmatpush.msra.mxu0 %v1047
        %1065 = vmatpush.msra.mxu0 %v1046
        %1066 = vmatpush.msra.mxu0 %v1045
        %1067 = vmatpush.msra.mxu0 %v1044
        %1068 = vmatpush.msra.mxu0 %v1043
        %1069 = vmatpush.msra.mxu0 %v1042
        %1070 = vmatpush.msra.mxu0 %v1041
        %1071 = vmatpush.msra.mxu0 %v1040
        %1072 = vmatpush.msra.mxu0 %v1039
        %1073 = vmatpush.msra.mxu0 %v1038
        %1074 = vmatmul.f32.gmra.mxu0 %v1037
        %v1075 = vpop.f32.mrf.mxu0
        %v1076 = vadd.f32 %v1056, %v1075
        %1077 = vdwg.mxu0
        %v1078 = vmul.f32 %v1076, 0.01
        %v1079 = vmax.f32 %v1076, %v1078
        %v1080 = vld [vmem:[%s8] sm:$0xff]
        %v1081 = vld [vmem:[#allocation8] sm:$0x1]
        %v1083 = vperm.slane %v1081, 0
        %vm1085 = vcmask 64512
        %v1087 = vsel %vm1085, %v957, 0
        %1089 = vmatpush.msra.mxu0 0.0
        %1090 = vmatpush.msra.mxu0 0.0
        %1091 = vmatpush.msra.mxu0 0.0
        %1092 = vmatpush.msra.mxu0 0.0
        %1093 = vmatpush.msra.mxu0 0.0
        %1094 = vmatpush.msra.mxu0 0.0
        %1095 = vmatpush.msra.mxu0 0.0
        %1096 = vmatpush.msra.mxu0 0.0
        %1097 = vmatpush.msra.mxu0 0.0
        %1098 = vmatpush.msra.mxu0 0.0
        %1099 = vmatpush.msra.mxu0 0.0
        %1100 = vmatpush.msra.mxu0 0.0
        %1101 = vmatpush.msra.mxu0 0.0
        %1102 = vmatpush.msra.mxu0 0.0
        %1103 = vmatpush.msra.mxu0 0.0
        %1104 = vmatpush.msra.mxu0 %v1080
        %1105 = vmatmul.f32.gmra.mxu0 %v1087
        %v1106 = vpop.f32.mrf.mxu0
        %v1107 = vadd.f32 %v1083, %v1106
        %1108 = vdwg.mxu0
        %v1109 = vmul.f32 %v1107, 0.01
        %v1110 = vmax.f32 %v1107, %v1109
        %v1111 = vld [vmem:[#allocation10] sm:$0xff]
        %v1112 = vld [vmem:[#allocation10 + $0x8] sm:$0xff]
        %v1113 = vld [vmem:[#allocation10 + $0x10] sm:$0xff]
        %v1114 = vld [vmem:[#allocation10 + $0x18] sm:$0xff]
        %v1115 = vld [vmem:[#allocation10 + $0x20] sm:$0xff]
        %v1116 = vld [vmem:[#allocation10 + $0x28] sm:$0xff]
        %v1117 = vld [vmem:[#allocation10 + $0x30] sm:$0xff]
        %v1118 = vld [vmem:[#allocation10 + $0x38] sm:$0xff]
        %v1119 = vld [vmem:[#allocation10 + $0x40] sm:$0xff]
        %v1120 = vld [vmem:[#allocation10 + $0x48] sm:$0xff]
        %v1121 = vld [vmem:[#allocation10 + $0x50] sm:$0xff]
        %v1122 = vld [vmem:[#allocation10 + $0x58] sm:$0xff]
        %v1123 = vld [vmem:[#allocation10 + $0x60] sm:$0xff]
        %v1124 = vld [vmem:[#allocation10 + $0x68] sm:$0xff]
        %v1125 = vld [vmem:[#allocation10 + $0x70] sm:$0xff]
        %v1126 = vld [vmem:[#allocation10 + $0x78] sm:$0xff]
        %v1127 = vld [vmem:[#allocation11] sm:$0x1]
        %v1129 = vperm.slane %v1127, 0
        %1131 = vmatpush.msra.mxu0 %v1126
        %1132 = vmatpush.msra.mxu0 %v1125
        %1133 = vmatpush.msra.mxu0 %v1124
        %1134 = vmatpush.msra.mxu0 %v1123
        %1135 = vmatpush.msra.mxu0 %v1122
        %1136 = vmatpush.msra.mxu0 %v1121
        %1137 = vmatpush.msra.mxu0 %v1120
        %1138 = vmatpush.msra.mxu0 %v1119
        %1139 = vmatpush.msra.mxu0 %v1118
        %1140 = vmatpush.msra.mxu0 %v1117
        %1141 = vmatpush.msra.mxu0 %v1116
        %1142 = vmatpush.msra.mxu0 %v1115
        %1143 = vmatpush.msra.mxu0 %v1114
        %1144 = vmatpush.msra.mxu0 %v1113
        %1145 = vmatpush.msra.mxu0 %v1112
        %1146 = vmatpush.msra.mxu0 %v1111
        %1147 = vmatmul.f32.gmra.mxu0 %v1110
        %v1148 = vpop.f32.mrf.mxu0
        %v1149 = vadd.f32 %v1129, %v1148
        %1150 = vdwg.mxu0
        %v1151 = vmul.f32 %v1149, 0.01
        %v1152 = vmax.f32 %v1149, %v1151
        %v1153 = vld [vmem:[#allocation13] sm:$0xff]
        %v1154 = vld [vmem:[#allocation13 + $0x8] sm:$0xff]
        %v1155 = vld [vmem:[#allocation13 + $0x10] sm:$0xff]
        %v1156 = vld [vmem:[#allocation13 + $0x18] sm:$0xff]
        %v1157 = vld [vmem:[#allocation13 + $0x20] sm:$0xff]
        %v1158 = vld [vmem:[#allocation13 + $0x28] sm:$0xff]
        %v1159 = vld [vmem:[#allocation13 + $0x30] sm:$0xff]
        %v1160 = vld [vmem:[#allocation13 + $0x38] sm:$0xff]
        %v1161 = vld [vmem:[#allocation13 + $0x40] sm:$0xff]
        %v1162 = vld [vmem:[#allocation13 + $0x48] sm:$0xff]
        %v1163 = vld [vmem:[#allocation13 + $0x50] sm:$0xff]
        %v1164 = vld [vmem:[#allocation13 + $0x58] sm:$0xff]
        %v1165 = vld [vmem:[#allocation13 + $0x60] sm:$0xff]
        %v1166 = vld [vmem:[#allocation13 + $0x68] sm:$0xff]
        %v1167 = vld [vmem:[#allocation13 + $0x70] sm:$0xff]
        %v1168 = vld [vmem:[#allocation13 + $0x78] sm:$0xff]
        %v1169 = vld [vmem:[#allocation13 + $0x80] sm:$0xff]
        %v1170 = vld [vmem:[#allocation13 + $0x88] sm:$0xff]
        %v1171 = vld [vmem:[#allocation13 + $0x90] sm:$0xff]
        %v1172 = vld [vmem:[#allocation13 + $0x98] sm:$0xff]
        %v1173 = vld [vmem:[#allocation13 + $0xa0] sm:$0xff]
        %v1174 = vld [vmem:[#allocation13 + $0xa8] sm:$0xff]
        %v1175 = vld [vmem:[#allocation13 + $0xb0] sm:$0xff]
        %v1176 = vld [vmem:[#allocation13 + $0xb8] sm:$0xff]
        %v1177 = vld [vmem:[#allocation13 + $0xc0] sm:$0xff]
        %v1178 = vld [vmem:[#allocation13 + $0xc8] sm:$0xff]
        %v1179 = vld [vmem:[#allocation13 + $0xd0] sm:$0xff]
        %v1180 = vld [vmem:[#allocation13 + $0xd8] sm:$0xff]
        %v1181 = vld [vmem:[#allocation13 + $0xe0] sm:$0xff]
        %v1182 = vld [vmem:[#allocation13 + $0xe8] sm:$0xff]
        %v1183 = vld [vmem:[#allocation13 + $0xf0] sm:$0xff]
        %v1184 = vld [vmem:[#allocation13 + $0xf8] sm:$0xff]
        %v1185 = vld [vmem:[#allocation14] sm:$0x1]
        %v1187 = vperm.slane %v1185, 0
        %1189 = vmatpush.msra.mxu0 %v1168
        %1190 = vmatpush.msra.mxu0 %v1167
        %1191 = vmatpush.msra.mxu0 %v1166
        %1192 = vmatpush.msra.mxu0 %v1165
        %1193 = vmatpush.msra.mxu0 %v1164
        %1194 = vmatpush.msra.mxu0 %v1163
        %1195 = vmatpush.msra.mxu0 %v1162
        %1196 = vmatpush.msra.mxu0 %v1161
        %1197 = vmatpush.msra.mxu0 %v1160
        %1198 = vmatpush.msra.mxu0 %v1159
        %1199 = vmatpush.msra.mxu0 %v1158
        %1200 = vmatpush.msra.mxu0 %v1157
        %1201 = vmatpush.msra.mxu0 %v1156
        %1202 = vmatpush.msra.mxu0 %v1155
        %1203 = vmatpush.msra.mxu0 %v1154
        %1204 = vmatpush.msra.mxu0 %v1153
        %1205 = vmatmul.f32.gmra.mxu0 %v1152
        %v1206 = vpop.f32.mrf.mxu0
        %v1207 = vadd.f32 %v1187, %v1206
        %1208 = vdwg.mxu0
        %1209 = vmatpush.msra.mxu0 %v1184
        %1210 = vmatpush.msra.mxu0 %v1183
        %1211 = vmatpush.msra.mxu0 %v1182
        %1212 = vmatpush.msra.mxu0 %v1181
        %1213 = vmatpush.msra.mxu0 %v1180
        %1214 = vmatpush.msra.mxu0 %v1179
        %1215 = vmatpush.msra.mxu0 %v1178
        %1216 = vmatpush.msra.mxu0 %v1177
        %1217 = vmatpush.msra.mxu0 %v1176
        %1218 = vmatpush.msra.mxu0 %v1175
        %1219 = vmatpush.msra.mxu0 %v1174
        %1220 = vmatpush.msra.mxu0 %v1173
        %1221 = vmatpush.msra.mxu0 %v1172
        %1222 = vmatpush.msra.mxu0 %v1171
        %1223 = vmatpush.msra.mxu0 %v1170
        %1224 = vmatpush.msra.mxu0 %v1169
        %1225 = vmatmul.f32.gmra.mxu0 %v1079
        %v1226 = vpop.f32.mrf.mxu0
        %v1227 = vadd.f32 %v1207, %v1226
        %1228 = vdwg.mxu0
        %v1229 = vmul.f32 %v1227, 0.01
        %v1230 = vmax.f32 %v1227, %v1229
        %v1231 = vld [vmem:[%s14] sm:$0xff]
        %v1232 = vld [vmem:[%s14 + $0x8] sm:$0xff]
        %v1233 = vld [vmem:[%s14 + $0x10] sm:$0xff]
        %v1234 = vld [vmem:[%s14 + $0x18] sm:$0xff]
        %v1235 = vld [vmem:[%s14 + $0x20] sm:$0xff]
        %v1236 = vld [vmem:[%s14 + $0x28] sm:$0xff]
        %v1237 = vld [vmem:[%s14 + $0x30] sm:$0xff]
        %v1238 = vld [vmem:[%s14 + $0x38] sm:$0xff]
        %v1239 = vld [vmem:[%s14 + $0x40] sm:$0xff]
        %v1240 = vld [vmem:[%s14 + $0x48] sm:$0xff]
        %v1241 = vld [vmem:[%s14 + $0x50] sm:$0xff]
        %v1242 = vld [vmem:[%s14 + $0x58] sm:$0xff]
        %v1243 = vld [vmem:[%s14 + $0x60] sm:$0xff]
        %v1244 = vld [vmem:[%s14 + $0x68] sm:$0xff]
        %v1245 = vld [vmem:[%s14 + $0x70] sm:$0xff]
        %v1246 = vld [vmem:[%s14 + $0x78] sm:$0xff]
        %v1247 = vld [vmem:[#allocation16] sm:$0x1]
        %v1249 = vperm.slane %v1247, 0
        %1251 = vmatpush.msra.mxu0 %v1246
        %1252 = vmatpush.msra.mxu0 %v1245
        %1253 = vmatpush.msra.mxu0 %v1244
        %1254 = vmatpush.msra.mxu0 %v1243
        %1255 = vmatpush.msra.mxu0 %v1242
        %1256 = vmatpush.msra.mxu0 %v1241
        %1257 = vmatpush.msra.mxu0 %v1240
        %1258 = vmatpush.msra.mxu0 %v1239
        %1259 = vmatpush.msra.mxu0 %v1238
        %1260 = vmatpush.msra.mxu0 %v1237
        %1261 = vmatpush.msra.mxu0 %v1236
        %1262 = vmatpush.msra.mxu0 %v1235
        %1263 = vmatpush.msra.mxu0 %v1234
        %1264 = vmatpush.msra.mxu0 %v1233
        %1265 = vmatpush.msra.mxu0 %v1232
        %1266 = vmatpush.msra.mxu0 %v1231
        %1267 = vmatmul.f32.gmra.mxu0 %v1230
        %v1268 = vpop.f32.mrf.mxu0
        %v1269 = vadd.f32 %v1249, %v1268
        %1270 = vdwg.mxu0
        %v1271 = vmul.f32 %v1269, 0.01
        %v1272 = vmax.f32 %v1269, %v1271
        %v1273 = vld [vmem:[#allocation17] sm:$0x1]
        %v1275 = vperm.slane %v1273, 0
        %v1277 = vmul.f32 %v1272, %v1275
        %vm1278 = vcmask 523264
        %v1279 = vsel %vm1278, %v1277, 0.0
        %1280 = vadd.xlane.f32.xlu0 %v1279
        %v1281 = vpop.xlane.xlu0 %1280
        %v1282 = vld [vmem:[#allocation2] sm:$0x1]
        %v1284 = vperm.slane %v1282, 0
        %v1286 = vadd.f32 %v1281, %v1284
        %v1287 = vld [vmem:[%s926] sm:$0xff]
        %v1288 = vld [vmem:[%s935] sm:$0xff]
        %v1289 = vld [vmem:[%s935 + $0x8] sm:$0xff]
        %1290 = vmatpush.msra.mxu0 %v975
        %1291 = vmatpush.msra.mxu0 %v974
        %1292 = vmatpush.msra.mxu0 %v973
        %1293 = vmatpush.msra.mxu0 %v972
        %1294 = vmatpush.msra.mxu0 %v971
        %1295 = vmatpush.msra.mxu0 %v970
        %1296 = vmatpush.msra.mxu0 %v969
        %1297 = vmatpush.msra.mxu0 %v968
        %1298 = vmatpush.msra.mxu0 %v967
        %1299 = vmatpush.msra.mxu0 %v966
        %1300 = vmatpush.msra.mxu0 %v965
        %1301 = vmatpush.msra.mxu0 %v964
        %1302 = vmatpush.msra.mxu0 %v963
        %1303 = vmatpush.msra.mxu0 %v962
        %1304 = vmatpush.msra.mxu0 %v961
        %1305 = vmatpush.msra.mxu0 %v960
        %1306 = vmatmul.f32.gmra.mxu0 %v1288
        %v1307 = vpop.f32.mrf.mxu0
        %v1308 = vadd.f32 %v994, %v1307
        %1309 = vdwg.mxu0
        %1310 = vmatpush.msra.mxu0 %v991
        %1311 = vmatpush.msra.mxu0 %v990
        %1312 = vmatpush.msra.mxu0 %v989
        %1313 = vmatpush.msra.mxu0 %v988
        %1314 = vmatpush.msra.mxu0 %v987
        %1315 = vmatpush.msra.mxu0 %v986
        %1316 = vmatpush.msra.mxu0 %v985
        %1317 = vmatpush.msra.mxu0 %v984
        %1318 = vmatpush.msra.mxu0 %v983
        %1319 = vmatpush.msra.mxu0 %v982
        %1320 = vmatpush.msra.mxu0 %v981
        %1321 = vmatpush.msra.mxu0 %v980
        %1322 = vmatpush.msra.mxu0 %v979
        %1323 = vmatpush.msra.mxu0 %v978
        %1324 = vmatpush.msra.mxu0 %v977
        %1325 = vmatpush.msra.mxu0 %v976
        %1326 = vmatmul.f32.gmra.mxu0 %v1289
        %v1327 = vpop.f32.mrf.mxu0
        %v1328 = vadd.f32 %v1308, %v1327
        %1329 = vdwg.mxu0
        %v1330 = vmul.f32 %v1328, 0.01
        %v1331 = vmax.f32 %v1328, %v1330
        %1332 = vmatpush.msra.mxu0 %v1053
        %1333 = vmatpush.msra.mxu0 %v1052
        %1334 = vmatpush.msra.mxu0 %v1051
        %1335 = vmatpush.msra.mxu0 %v1050
        %1336 = vmatpush.msra.mxu0 %v1049
        %1337 = vmatpush.msra.mxu0 %v1048
        %1338 = vmatpush.msra.mxu0 %v1047
        %1339 = vmatpush.msra.mxu0 %v1046
        %1340 = vmatpush.msra.mxu0 %v1045
        %1341 = vmatpush.msra.mxu0 %v1044
        %1342 = vmatpush.msra.mxu0 %v1043
        %1343 = vmatpush.msra.mxu0 %v1042
        %1344 = vmatpush.msra.mxu0 %v1041
        %1345 = vmatpush.msra.mxu0 %v1040
        %1346 = vmatpush.msra.mxu0 %v1039
        %1347 = vmatpush.msra.mxu0 %v1038
        %1348 = vmatmul.f32.gmra.mxu0 %v1331
        %v1349 = vpop.f32.mrf.mxu0
        %v1350 = vadd.f32 %v1056, %v1349
        %1351 = vdwg.mxu0
        %v1352 = vmul.f32 %v1350, 0.01
        %v1353 = vmax.f32 %v1350, %v1352
        %v1355 = vsel %vm1085, %v1287, 0
        %1357 = vmatpush.msra.mxu0 0.0
        %1358 = vmatpush.msra.mxu0 0.0
        %1359 = vmatpush.msra.mxu0 0.0
        %1360 = vmatpush.msra.mxu0 0.0
        %1361 = vmatpush.msra.mxu0 0.0
        %1362 = vmatpush.msra.mxu0 0.0
        %1363 = vmatpush.msra.mxu0 0.0
        %1364 = vmatpush.msra.mxu0 0.0
        %1365 = vmatpush.msra.mxu0 0.0
        %1366 = vmatpush.msra.mxu0 0.0
        %1367 = vmatpush.msra.mxu0 0.0
        %1368 = vmatpush.msra.mxu0 0.0
        %1369 = vmatpush.msra.mxu0 0.0
        %1370 = vmatpush.msra.mxu0 0.0
        %1371 = vmatpush.msra.mxu0 0.0
        %1372 = vmatpush.msra.mxu0 %v1080
        %1373 = vmatmul.f32.gmra.mxu0 %v1355
        %v1374 = vpop.f32.mrf.mxu0
        %v1375 = vadd.f32 %v1083, %v1374
        %1376 = vdwg.mxu0
        %v1377 = vmul.f32 %v1375, 0.01
        %v1378 = vmax.f32 %v1375, %v1377
        %1379 = vmatpush.msra.mxu0 %v1126
        %1380 = vmatpush.msra.mxu0 %v1125
        %1381 = vmatpush.msra.mxu0 %v1124
        %1382 = vmatpush.msra.mxu0 %v1123
        %1383 = vmatpush.msra.mxu0 %v1122
        %1384 = vmatpush.msra.mxu0 %v1121
        %1385 = vmatpush.msra.mxu0 %v1120
        %1386 = vmatpush.msra.mxu0 %v1119
        %1387 = vmatpush.msra.mxu0 %v1118
        %1388 = vmatpush.msra.mxu0 %v1117
        %1389 = vmatpush.msra.mxu0 %v1116
        %1390 = vmatpush.msra.mxu0 %v1115
        %1391 = vmatpush.msra.mxu0 %v1114
        %1392 = vmatpush.msra.mxu0 %v1113
        %1393 = vmatpush.msra.mxu0 %v1112
        %1394 = vmatpush.msra.mxu0 %v1111
        %1395 = vmatmul.f32.gmra.mxu0 %v1378
        %v1396 = vpop.f32.mrf.mxu0
        %v1397 = vadd.f32 %v1129, %v1396
        %1398 = vdwg.mxu0
        %v1399 = vmul.f32 %v1397, 0.01
        %v1400 = vmax.f32 %v1397, %v1399
        %1401 = vmatpush.msra.mxu0 %v1168
        %1402 = vmatpush.msra.mxu0 %v1167
        %1403 = vmatpush.msra.mxu0 %v1166
        %1404 = vmatpush.msra.mxu0 %v1165
        %1405 = vmatpush.msra.mxu0 %v1164
        %1406 = vmatpush.msra.mxu0 %v1163
        %1407 = vmatpush.msra.mxu0 %v1162
        %1408 = vmatpush.msra.mxu0 %v1161
        %1409 = vmatpush.msra.mxu0 %v1160
        %1410 = vmatpush.msra.mxu0 %v1159
        %1411 = vmatpush.msra.mxu0 %v1158
        %1412 = vmatpush.msra.mxu0 %v1157
        %1413 = vmatpush.msra.mxu0 %v1156
        %1414 = vmatpush.msra.mxu0 %v1155
        %1415 = vmatpush.msra.mxu0 %v1154
        %1416 = vmatpush.msra.mxu0 %v1153
        %1417 = vmatmul.f32.gmra.mxu0 %v1400
        %v1418 = vpop.f32.mrf.mxu0
        %v1419 = vadd.f32 %v1187, %v1418
        %1420 = vdwg.mxu0
        %1421 = vmatpush.msra.mxu0 %v1184
        %1422 = vmatpush.msra.mxu0 %v1183
        %1423 = vmatpush.msra.mxu0 %v1182
        %1424 = vmatpush.msra.mxu0 %v1181
        %1425 = vmatpush.msra.mxu0 %v1180
        %1426 = vmatpush.msra.mxu0 %v1179
        %1427 = vmatpush.msra.mxu0 %v1178
        %1428 = vmatpush.msra.mxu0 %v1177
        %1429 = vmatpush.msra.mxu0 %v1176
        %1430 = vmatpush.msra.mxu0 %v1175
        %1431 = vmatpush.msra.mxu0 %v1174
        %1432 = vmatpush.msra.mxu0 %v1173
        %1433 = vmatpush.msra.mxu0 %v1172
        %1434 = vmatpush.msra.mxu0 %v1171
        %1435 = vmatpush.msra.mxu0 %v1170
        %1436 = vmatpush.msra.mxu0 %v1169
        %1437 = vmatmul.f32.gmra.mxu0 %v1353
        %v1438 = vpop.f32.mrf.mxu0
        %v1439 = vadd.f32 %v1419, %v1438
        %1440 = vdwg.mxu0
        %v1441 = vmul.f32 %v1439, 0.01
        %v1442 = vmax.f32 %v1439, %v1441
        %1443 = vmatpush.msra.mxu0 %v1246
        %1444 = vmatpush.msra.mxu0 %v1245
        %1445 = vmatpush.msra.mxu0 %v1244
        %1446 = vmatpush.msra.mxu0 %v1243
        %1447 = vmatpush.msra.mxu0 %v1242
        %1448 = vmatpush.msra.mxu0 %v1241
        %1449 = vmatpush.msra.mxu0 %v1240
        %1450 = vmatpush.msra.mxu0 %v1239
        %1451 = vmatpush.msra.mxu0 %v1238
        %1452 = vmatpush.msra.mxu0 %v1237
        %1453 = vmatpush.msra.mxu0 %v1236
        %1454 = vmatpush.msra.mxu0 %v1235
        %1455 = vmatpush.msra.mxu0 %v1234
        %1456 = vmatpush.msra.mxu0 %v1233
        %1457 = vmatpush.msra.mxu0 %v1232
        %1458 = vmatpush.msra.mxu0 %v1231
        %1459 = vmatmul.f32.gmra.mxu0 %v1442
        %v1460 = vpop.f32.mrf.mxu0
        %v1461 = vadd.f32 %v1249, %v1460
        %1462 = vdwg.mxu0
        %v1463 = vmul.f32 %v1461, 0.01
        %v1464 = vmax.f32 %v1461, %v1463
        %v1465 = vmul.f32 %v1464, %v1275
        %v1466 = vsel %vm1278, %v1465, 0.0
        %1467 = vadd.xlane.f32.xlu0 %v1466
        %v1468 = vpop.xlane.xlu0 %1467
        %v1469 = vadd.f32 %v1468, %v1284
        %v1470 = vld [vmem:[%s938] sm:$0x1]
        %vm1471 = vcmask 7168
        %v1472 = vsel %vm1471, %v1286, 0.0
        %v1473 = vrot.slane %v1472, 4
        %v1474 = vadd.f32 %v1472, %v1473
        %v1475 = vrot.slane %v1474, 2
        %v1476 = vadd.f32 %v1474, %v1475
        %v1477 = vrot.slane %v1476, 1
        %v1478 = vadd.f32 %v1476, %v1477
        %v1479 = vadd.f32 %v1470, %v1478
        %vm1480 = vcmask 0
        %1481 = vst.msk [vmem:[%s938] sm:$0x1] %vm1480, %v1479
        %v1482 = vld [vmem:[%s941] sm:$0x1]
        %v1483 = vand.u32 2147483647, %v1286
        %v1484 = vsel %vm1471, %v1483, 0.0
        %v1485 = vrot.slane %v1484, 4
        %v1486 = vadd.f32 %v1484, %v1485
        %v1487 = vrot.slane %v1486, 2
        %v1488 = vadd.f32 %v1486, %v1487
        %v1489 = vrot.slane %v1488, 1
        %v1490 = vadd.f32 %v1488, %v1489
        %v1491 = vadd.f32 %v1482, %v1490
        %1492 = vst.msk [vmem:[%s941] sm:$0x1] %vm1480, %v1491
        %v1493 = vld [vmem:[%s944] sm:$0x1]
        %v1494 = vsel %vm1471, %v1469, 0.0
        %v1495 = vrot.slane %v1494, 4
        %v1496 = vadd.f32 %v1494, %v1495
        %v1497 = vrot.slane %v1496, 2
        %v1498 = vadd.f32 %v1496, %v1497
        %v1499 = vrot.slane %v1498, 1
        %v1500 = vadd.f32 %v1498, %v1499
        %v1501 = vadd.f32 %v1493, %v1500
        %1502 = vst.msk [vmem:[%s944] sm:$0x1] %vm1480, %v1501
        %v1503 = vld [vmem:[%s947] sm:$0x1]
        %v1504 = vand.u32 2147483647, %v1469
        %v1505 = vsel %vm1471, %v1504, 0.0
        %v1506 = vrot.slane %v1505, 4
        %v1507 = vadd.f32 %v1505, %v1506
        %v1508 = vrot.slane %v1507, 2
        %v1509 = vadd.f32 %v1507, %v1508
        %v1510 = vrot.slane %v1509, 1
        %v1511 = vadd.f32 %v1509, %v1510
        %v1512 = vadd.f32 %v1503, %v1511
        %1513 = vst.msk [vmem:[%s947] sm:$0x1] %vm1480, %v1512
        %p1514 = scmp.lt.s32.totalorder %s45, 1
        %s1515 = scalar_select %p1514, %s45, 1
        %s1516 = scalar_lea.vmem %s18, %s1515
        %p1517 = scmp.lt.s32.totalorder %s45, 1
        %s1518 = scalar_select %p1517, %s45, 1
        %s1519 = scalar_lea.vmem %s19, %s1518
        %p1520 = scmp.lt.s32.totalorder %s45, 1
        %s1521 = scalar_select %p1520, %s45, 1
        %s1522 = scalar_lea.vmem %s20, %s1521
        %p1523 = scmp.lt.s32.totalorder %s45, 1
        %s1524 = scalar_select %p1523, %s45, 1
        %s1525 = scalar_lea.vmem %s21, %s1524
        // Predicated region
        $region137: #{reward_net_forward.1} parent=91 // pred_check
          %p1526 = pneg %p477
        $region138: #{reward_net_forward.1} parent=91 // pred_check_branch
          %1528 = sbr.rel (%p1526) target = $region140
        $region139: #{reward_net_forward.1} parent=91 // pred_region
          _
        $region140: #{reward_net_forward.1} parent=91 // pred_fallthru
          _
        // Predicated region
        $region141: #{reward_net_forward.1} parent=91 // pred_check
          %p1529 = pneg %p503
        $region142: #{reward_net_forward.1} parent=91 // pred_check_branch
          %1531 = sbr.rel (%p1529) target = $region144
        $region143: #{reward_net_forward.1} parent=91 // pred_region
          _
        $region144: #{reward_net_forward.1} parent=91 // pred_fallthru
          _
        // Predicated region
        $region145: #{reward_net_forward.1} parent=91 // pred_check
          %p1532 = pneg %p529
        $region146: #{reward_net_forward.1} parent=91 // pred_check_branch
          %1534 = sbr.rel (%p1532) target = $region148
        $region147: #{reward_net_forward.1} parent=91 // pred_region
          _
        $region148: #{reward_net_forward.1} parent=91 // pred_fallthru
          _
        // Predicated region
        $region149: #{reward_net_forward.1} parent=91 // pred_check
          %p1535 = pneg %p555
        $region150: #{reward_net_forward.1} parent=91 // pred_check_branch
          %1537 = sbr.rel (%p1535) target = $region152
        $region151: #{reward_net_forward.1} parent=91 // pred_region
          _
        $region152: #{reward_net_forward.1} parent=91 // pred_fallthru
          _
      $region92: #{reward_net_forward.1} parent=5 // pred_fallthru
        _
      %p1538 = scmp.le.s32.totalorder 2, %s36
      // Predicated region
      $region153: #{reward_net_forward.1} parent=5 // pred_check
        %p1539 = pneg %p1538
      $region154: #{reward_net_forward.1} parent=5 // pred_check_branch
        %1541 = sbr.rel (%p1539) target = $region156
      $region155: #{reward_net_forward.1} parent=5 // pred_region
        %s1542 = ssub.s32 %s36, 2
        // Predicated region
        $region157: #{reward_net_forward.1} parent=155 // pred_check
          %p1543 = pneg %p483
        $region158: #{reward_net_forward.1} parent=155 // pred_check_branch
          %1545 = sbr.rel (%p1543) target = $region160
        $region159: #{reward_net_forward.1} parent=155 // pred_region
          %p1546 = scmp.lt.s32.totalorder %s47, 1
          %s1547 = scalar_select %p1546, %s47, 1
          %s1548 = scalar_lea.vmem %s18, %s1547
        $region160: #{reward_net_forward.1} parent=155 // pred_fallthru
          _
        // Predicated region
        $region161: #{reward_net_forward.1} parent=155 // pred_check
          %p1549 = pneg %p509
        $region162: #{reward_net_forward.1} parent=155 // pred_check_branch
          %1551 = sbr.rel (%p1549) target = $region164
        $region163: #{reward_net_forward.1} parent=155 // pred_region
          %p1552 = scmp.lt.s32.totalorder %s47, 1
          %s1553 = scalar_select %p1552, %s47, 1
          %s1554 = scalar_lea.vmem %s19, %s1553
        $region164: #{reward_net_forward.1} parent=155 // pred_fallthru
          _
        // Predicated region
        $region165: #{reward_net_forward.1} parent=155 // pred_check
          %p1555 = pneg %p535
        $region166: #{reward_net_forward.1} parent=155 // pred_check_branch
          %1557 = sbr.rel (%p1555) target = $region168
        $region167: #{reward_net_forward.1} parent=155 // pred_region
          %p1558 = scmp.lt.s32.totalorder %s47, 1
          %s1559 = scalar_select %p1558, %s47, 1
          %s1560 = scalar_lea.vmem %s20, %s1559
        $region168: #{reward_net_forward.1} parent=155 // pred_fallthru
          _
        // Predicated region
        $region169: #{reward_net_forward.1} parent=155 // pred_check
          %p1561 = pneg %p561
        $region170: #{reward_net_forward.1} parent=155 // pred_check_branch
          %1563 = sbr.rel (%p1561) target = $region172
        $region171: #{reward_net_forward.1} parent=155 // pred_region
          %p1564 = scmp.lt.s32.totalorder %s47, 1
          %s1565 = scalar_select %p1564, %s47, 1
          %s1566 = scalar_lea.vmem %s21, %s1565
        $region172: #{reward_net_forward.1} parent=155 // pred_fallthru
          _
      $region156: #{reward_net_forward.1} parent=5 // pred_fallthru
        _
    $region6: #{reward_net_forward.1} parent=1 // loop_footer
      %s40 = sadd.s32 1, %s36
    $region7: #{reward_net_forward.1} parent=1 // loop_footer_branch
      %35 = sbr.rel target = $region3
    $region8: #{reward_net_forward.1} parent=1 // loop_exit
      _
    %1567 = vsyncpa [#allocation4], 1
    %s1568 = scalar_lea.sflag [#allocation4], 1
    %1569 = vsyncpa %s1568, 1
    %1570 = vsyncpa [#allocation6], 1
    %1571 = vsyncpa [#allocation9], 1
    %1572 = vsyncpa [#allocation12], 1
    %1573 = vsyncpa [#allocation15], 1
    %1574 = vsyncpa [#allocation18], 1

</llo_original>
